<compile_context>
chip_gen: v7x
topology: tpu7x:2x2x1
jax: 0.10.0
libtpu: 0.0.40
codegen_flags: <defaults>
</compile_context>

<pallas_src>
import math

import jax
import jax.numpy as jnp
from jax import lax
from jax.experimental import pallas as pl
from jax.experimental.pallas import tpu as pltpu


# ----------------------------------------------------------------------------------- #
# Kernel
# ----------------------------------------------------------------------------------- #
def _crop_resize_kernel(wy_ref, wxt_ref, img_ref, out_ref):
    """One grid step processes `bb` boxes.

    wy_ref : (bb*oh, H)     y-interp weights, rows ordered (box, oy)
    wxt_ref: (bb, W, ow)    x-interp weights (already transposed), one per box
    img_ref: (C, H, W)      image (constant across the grid, single-buffered)
    out_ref: (C*oh, bb*ow)  lane-dense output slab, rows (c, oy), cols (box, ox)
    """
    bb, _, ow = wxt_ref.shape
    C = img_ref.shape[0]
    oh = out_ref.shape[0] // C

    wy = wy_ref[...]            # hoist loads; reused across the static channel loop
    wxt = wxt_ref[...]

    for c in range(C):          # static unroll; C is small (e.g. 3/4)
        # Stage 1: y interpolation for every box of the block in one MXU matmul.
        tmp = jnp.dot(wy, img_ref[c], preferred_element_type=jnp.float32)  # (bb*oh, W)
        # Leading-dim split only (no lane relayout); cast back to the MXU operand dtype.
        lhs = tmp.reshape(bb, oh, tmp.shape[1]).astype(wxt.dtype)
        # Stage 2: x interpolation, one contraction batched over the boxes of the block:
        #   (bb, oh, W) x (bb, W, ow) -> (bb, oh, ow), f32 accumulation.
        res = lax.dot_general(lhs, wxt,
                              dimension_numbers=(((2,), (1,)), ((0,), (0,))),
                              preferred_element_type=jnp.float32)
        # Direct stores into static slices of the lane-dense output block
        # (no concatenate -> no extra full-slab copy, bounded register pressure).
        for b in range(bb):
            out_ref[c * oh:(c + 1) * oh, b * ow:(b + 1) * ow] = (
                res[b].astype(out_ref.dtype))


# ----------------------------------------------------------------------------------- #
# Interpolation weights (plain JAX; the kernel stays nearly pure MXU)
# ----------------------------------------------------------------------------------- #
def _bilinear_weights(boxes, oh, ow, H, W, scale):
    """Per-box 1-D bilinear matrices (zeros padding, align_corners=False), f32.

    Returns wy (K, oh, H) and wx (K, ow, W).  Relies on exact f32 equality of
    integer-valued coordinates; safe while H, W < 2**24 and the coordinate math
    stays in f32.
    """
    b = boxes.astype(jnp.float32) / scale
    xmin, ymin, xmax, ymax = b[:, 0], b[:, 1], b[:, 2], b[:, 3]
    a11 = (xmax - xmin) / ow
    a22 = (ymax - ymin) / oh

    def axis_weights(a, mn, osz, size):
        o = jnp.arange(osz, dtype=jnp.float32)
        src = a[:, None] * o[None, :] + mn[:, None] - 0.5        # (K, osz)
        s0 = jnp.floor(src)
        f = src - s0
        idx = jnp.arange(size, dtype=jnp.float32)                # (size,)
        # out-of-range floor indices match no idx -> weight 0 == zeros padding
        w0 = jnp.where(idx[None, None, :] == s0[:, :, None], 1.0 - f[:, :, None], 0.0)
        w1 = jnp.where(idx[None, None, :] == s0[:, :, None] + 1.0, f[:, :, None], 0.0)
        return w0 + w1                                           # (K, osz, size)

    wy = axis_weights(a22, ymin, oh, H)
    wx = axis_weights(a11, xmin, ow, W)
    return wy, wx


# ----------------------------------------------------------------------------------- #
# Wrapper
# ----------------------------------------------------------------------------------- #
def crop_resize(data, boxes, oh, ow, scale=1.0, box_block=None, compute_dtype=None):
    """data: (1, C, H, W), boxes: (K, 4) [xmin, ymin, xmax, ymax] -> (K, C, oh, ow).

    compute_dtype: MXU operand dtype.  Defaults to data.dtype; pass jnp.bfloat16 on
    v5e (bf16-native MXU) for ~2-4x matmul throughput with f32 accumulation.
    """
    assert data.shape[0] == 1, "CropResize.expand() semantics require N == 1"
    _, C, H, W = data.shape
    K = boxes.shape[0]
    out_dtype = data.dtype
    cdt = jnp.dtype(data.dtype if compute_dtype is None else compute_dtype)

    # ---- box_block sizing --------------------------------------------------------
    # Tile alignment of the non-full block dims (dtype-aware sublanes, 128 lanes).
    sub_mult = max(8, 32 // cdt.itemsize)                # 8 f32 / 16 bf16 / 32 int8-fp8
    row_align = sub_mult // math.gcd(oh, sub_mult)        # (box_block*oh) % sub_mult == 0
    lane_align = 128 // math.gcd(ow, 128)                 # (box_block*ow) % 128 == 0
    align = row_align * lane_align // math.gcd(row_align, lane_align)

    def vmem_bytes(bb):  # per-step working set (wy/wxt/out double-buffered, img single)
        itc, ito = cdt.itemsize, jnp.dtype(out_dtype).itemsize
        return (2 * (bb * oh * H + bb * W * ow) * itc
                + 2 * C * oh * bb * ow * ito
                + C * H * W * itc
                + 4 * bb * oh * (W + ow) * 4)            # f32 intermediates (with slack)

    if box_block is None:
        # ~256 output rows per step: fills the 256-wide MXU (v6e/v7x) and amortizes
        # the per-step pipeline overhead.
        box_block = max(1, 256 // max(1, oh))
        if K > 1:
            # Keep >= 2 "parallel" grid steps so both v7x TensorCores get work.
            box_block = min(box_block, pl.cdiv(K, 2))
        while box_block > 1 and vmem_bytes(box_block) > (24 << 20):  # v7x 64MiB headroom
            box_block = max(1, box_block // 2)
    if box_block >= K:
        box_block, nblk = K, 1      # single step: blocks == full arrays, no alignment needed
    else:
        box_block = align * pl.cdiv(box_block, align)
        nblk = pl.cdiv(K, box_block)
        if nblk == 1:
            box_block = K
    k_pad = nblk * box_block

    # ---- interpolation weights -----------------------------------------------------
    wy, wx = _bilinear_weights(boxes, oh, ow, H, W, scale)   # (K,oh,H), (K,ow,W) f32
    if k_pad != K:                                           # zero weights -> zero rows
        wy = jnp.concatenate([wy, jnp.zeros((k_pad - K, oh, H), wy.dtype)], axis=0)
        wx = jnp.concatenate([wx, jnp.zeros((k_pad - K, ow, W), wx.dtype)], axis=0)
    wy2d = wy.reshape(k_pad * oh, H).astype(cdt)             # rows ordered (box, oy)
    wxt = jnp.transpose(wx, (0, 2, 1)).astype(cdt)           # (k_pad, W, ow)
    img = data[0].astype(cdt)                                # (C, H, W)
    # TODO(synk): for HBM-scale images, DMA only the union row band of each box block
    # (scalar-prefetched row offsets / manual make_async_copy) instead of the full image.

    def run(img_spec):
        return pl.pallas_call(
            _crop_resize_kernel,
            grid_spec=pltpu.PrefetchScalarGridSpec(
                num_scalar_prefetch=0,
                grid=(nblk,),
                in_specs=[
                    pl.BlockSpec((box_block * oh, H), lambda i: (i, 0)),
                    pl.BlockSpec((box_block, W, ow), lambda i: (i, 0, 0)),
                    img_spec,
                ],
                out_specs=pl.BlockSpec((C * oh, box_block * ow), lambda i: (0, i)),
            ),
            out_shape=jax.ShapeDtypeStruct((C * oh, k_pad * ow), out_dtype),
            compiler_params=pltpu.CompilerParams(dimension_semantics=("parallel",)),
        )(wy2d, wxt, img)

    try:
        # The image block is constant across the grid (index_map always (0,0,0)):
        # single-buffer it to halve its resident VMEM.
        out2d = run(pl.BlockSpec((C, H, W), lambda i: (0, 0, 0),
                                 pipeline_mode=pl.Buffered(1)))
    except Exception:
        # Buffered(1) not accepted by this jax version -> default double buffering.
        out2d = run(pl.BlockSpec((C, H, W), lambda i: (0, 0, 0)))

    # Layout plumbing back to (K, C, oh, ow).  NOTE: this reshape/transpose is a real
    # XLA copy over HBM; consumers that can take the (c,oy)x(box,ox) slab should skip it.
    return out2d.reshape(C, oh, k_pad, ow).transpose(2, 0, 1, 3)[:K]


# ----------------------------------------------------------------------------------- #
# Pure-JAX reference (direct bilinear gather, zeros padding, align_corners=False)
# ----------------------------------------------------------------------------------- #
def crop_resize_ref(data, boxes, oh, ow, scale=1.0):
    boxes = boxes / scale
    _, C, H, W = data.shape
    img = data[0]
    oxs = jnp.arange(ow, dtype=jnp.float32)
    oys = jnp.arange(oh, dtype=jnp.float32)
    a11 = (boxes[:, 2] - boxes[:, 0]) / ow
    a22 = (boxes[:, 3] - boxes[:, 1]) / oh
    ix = a11[:, None] * oxs[None, :] + boxes[:, 0][:, None] - 0.5  # (K, ow)
    iy = a22[:, None] * oys[None, :] + boxes[:, 1][:, None] - 0.5  # (K, oh)

    def axis(coord, size):
        c0 = jnp.floor(coord)
        f = coord - c0
        c0i = c0.astype(jnp.int32)
        c1i = c0i + 1
        w0 = (1.0 - f) * ((c0i >= 0) & (c0i < size)).astype(jnp.float32)
        w1 = f * ((c1i >= 0) & (c1i < size)).astype(jnp.float32)
        return jnp.clip(c0i, 0, size - 1), jnp.clip(c1i, 0, size - 1), w0, w1

    x0, x1, wx0, wx1 = axis(ix, W)
    y0, y1, wy0, wy1 = axis(iy, H)

    def gather(yi, xi):  # yi:(K,oh) xi:(K,ow) -> (C,K,oh,ow)
        return img[:, yi[:, :, None], xi[:, None, :]]

    out = (gather(y0, x0) * (wy0[:, :, None] * wx0[:, None, :])[None]
           + gather(y0, x1) * (wy0[:, :, None] * wx1[:, None, :])[None]
           + gather(y1, x0) * (wy1[:, :, None] * wx0[:, None, :])[None]
           + gather(y1, x1) * (wy1[:, :, None] * wx1[:, None, :])[None])
    return jnp.transpose(out, (1, 0, 2, 3))


# ----------------------------------------------------------------------------------- #
if __name__ == "__main__":
    N, C, H, W = 1, 4, 16, 16
    OH, OW = 8, 8
    SCALE = 2.0

    key = jax.random.PRNGKey(0)
    k1, k2, k3, k4, k5 = jax.random.split(key, 5)
    data = jax.random.normal(k1, (N, C, H, W), dtype=jnp.float32)

    # --- test 1: small K -> single grid step (blocks == full arrays) ---
    K = 3
    xy_min = jax.random.uniform(k2, (K, 2), minval=0.0, maxval=W * SCALE * 0.4)
    wh = jax.random.uniform(k3, (K, 2), minval=2.0, maxval=W * SCALE * 0.6)
    boxes = jnp.concatenate([xy_min, xy_min + wh], axis=1)  # [xmin, ymin, xmax, ymax]

    out = jax.block_until_ready(crop_resize(data, boxes, OH, OW, scale=SCALE))
    ref = jax.block_until_ready(crop_resize_ref(data, boxes, OH, OW, scale=SCALE))
    assert out.shape == (K, C, OH, OW)
    assert jnp.allclose(out, ref, atol=1e-4, rtol=1e-4), "mismatch vs reference (K=3)"

    # --- test 2: larger K -> multi-step grid, box batching, zero-weight padding ---
    K2 = 19
    xy_min2 = jax.random.uniform(k4, (K2, 2), minval=0.0, maxval=W * SCALE * 0.4)
    wh2 = jax.random.uniform(k5, (K2, 2), minval=2.0, maxval=W * SCALE * 0.6)
    boxes2 = jnp.concatenate([xy_min2, xy_min2 + wh2], axis=1)

    out2 = jax.block_until_ready(crop_resize(data, boxes2, OH, OW, scale=SCALE))
    ref2 = jax.block_until_ready(crop_resize_ref(data, boxes2, OH, OW, scale=SCALE))
    assert out2.shape == (K2, C, OH, OW)
    assert jnp.allclose(out2, ref2, atol=1e-4, rtol=1e-4), "mismatch vs reference (K=19)"

    # --- test 3: bf16 MXU-operand path (v5e fast path), f32 accumulation ---
    # bf16 operands quantize the fractional interpolation weights (~2^-9 rel), so the
    # tolerance is intentionally loose.
    out3 = jax.block_until_ready(
        crop_resize(data, boxes2, OH, OW, scale=SCALE, compute_dtype=jnp.bfloat16))
    assert out3.shape == (K2, C, OH, OW)
    assert jnp.allclose(out3.astype(jnp.float32), ref2, atol=1e-1, rtol=5e-2), \
        "mismatch vs reference (bf16 compute path)"

    print("KERNEL_OK")
</pallas_src>

<mosaic_0001>
module attributes {stable_mosaic.version = 11 : i64} {
  func.func @_crop_resize_kernel(%arg0: i32, %arg1: memref<24x16xf32, #tpu.memory_space<vmem>>, %arg2: memref<3x16x8xf32, #tpu.memory_space<vmem>>, %arg3: memref<4x16x16xf32, #tpu.memory_space<vmem>>, %arg4: memref<32x24xf32, #tpu.memory_space<vmem>>) attributes {dimension_semantics = [#tpu.dimension_semantics<parallel>], iteration_bounds = array<i64: 1>, scalar_prefetch = 0 : i64, scratch_operands = 0 : i64, tpu.core_type = #tpu.core_type<tc>, window_params = [{transform_indices = @transform_0, window_bounds = array<i64: 24, 16>}, {transform_indices = @transform_1, window_bounds = array<i64: 3, 16, 8>}, {pipeline_mode = #tpu.pipeline_mode<synchronous>, transform_indices = @transform_2, window_bounds = array<i64: 4, 16, 16>}, {transform_indices = @transform_3, window_bounds = array<i64: 32, 24>}]} {
    %c0 = arith.constant 0 : index
    %c0_0 = arith.constant 0 : index
    %0 = vector.load %arg1[%c0, %c0_0] : memref<24x16xf32, #tpu.memory_space<vmem>>, vector<24x16xf32>
    %c0_1 = arith.constant 0 : index
    %c0_2 = arith.constant 0 : index
    %c0_3 = arith.constant 0 : index
    %1 = vector.load %arg2[%c0_1, %c0_2, %c0_3] : memref<3x16x8xf32, #tpu.memory_space<vmem>>, vector<3x16x8xf32>
    %c0_4 = arith.constant 0 : index
    %c0_5 = arith.constant 0 : index
    %c0_6 = arith.constant 0 : index
    %2 = vector.load %arg3[%c0_4, %c0_5, %c0_6] : memref<4x16x16xf32, #tpu.memory_space<vmem>>, vector<1x16x16xf32>
    %3 = vector.shape_cast %2 : vector<1x16x16xf32> to vector<16x16xf32>
    %cst = arith.constant dense<0.000000e+00> : vector<24x16xf32>
    %4 = tpu.matmul %0, %3, %cst {dimension_numbers = #tpu.dot_dimension_numbers<[1], [0], [0], [1], [0, 0, 1, 1], [], []>} : vector<24x16xf32>, vector<16x16xf32>, vector<24x16xf32> -> vector<24x16xf32>
    %5 = vector.shape_cast %4 : vector<24x16xf32> to vector<3x8x16xf32>
    %cst_7 = arith.constant dense<0.000000e+00> : vector<3x8x8xf32>
    %6 = tpu.matmul %5, %1, %cst_7 {dimension_numbers = #tpu.dot_dimension_numbers<[2], [1], [1], [2], [0, 0, 0, 1, 1, 2], [0], [0]>} : vector<3x8x16xf32>, vector<3x16x8xf32>, vector<3x8x8xf32> -> vector<3x8x8xf32>
    %7 = vector.extract_strided_slice %6 {offsets = [0, 0, 0], sizes = [1, 8, 8], strides = [1, 1, 1]} : vector<3x8x8xf32> to vector<1x8x8xf32>
    %8 = vector.shape_cast %7 : vector<1x8x8xf32> to vector<8x8xf32>
    %c0_8 = arith.constant 0 : index
    %c0_9 = arith.constant 0 : index
    %9 = vector.load %arg4[%c0_8, %c0_9] : memref<32x24xf32, #tpu.memory_space<vmem>>, vector<8x8xf32>
    tpu.vector_store %arg4[%c0_8, %c0_9], %8 {strides = array<i32>} : memref<32x24xf32, #tpu.memory_space<vmem>>, vector<8x8xf32>,
    %10 = vector.extract_strided_slice %6 {offsets = [1, 0, 0], sizes = [1, 8, 8], strides = [1, 1, 1]} : vector<3x8x8xf32> to vector<1x8x8xf32>
    %11 = vector.shape_cast %10 : vector<1x8x8xf32> to vector<8x8xf32>
    %c0_10 = arith.constant 0 : index
    %c8 = arith.constant 8 : index
    %12 = vector.load %arg4[%c0_10, %c8] : memref<32x24xf32, #tpu.memory_space<vmem>>, vector<8x8xf32>
    tpu.vector_store %arg4[%c0_10, %c8], %11 {strides = array<i32>} : memref<32x24xf32, #tpu.memory_space<vmem>>, vector<8x8xf32>,
    %13 = vector.extract_strided_slice %6 {offsets = [2, 0, 0], sizes = [1, 8, 8], strides = [1, 1, 1]} : vector<3x8x8xf32> to vector<1x8x8xf32>
    %14 = vector.shape_cast %13 : vector<1x8x8xf32> to vector<8x8xf32>
    %c0_11 = arith.constant 0 : index
    %c16 = arith.constant 16 : index
    %15 = vector.load %arg4[%c0_11, %c16] : memref<32x24xf32, #tpu.memory_space<vmem>>, vector<8x8xf32>
    tpu.vector_store %arg4[%c0_11, %c16], %14 {strides = array<i32>} : memref<32x24xf32, #tpu.memory_space<vmem>>, vector<8x8xf32>,
    %c1 = arith.constant 1 : index
    %c0_12 = arith.constant 0 : index
    %c0_13 = arith.constant 0 : index
    %16 = vector.load %arg3[%c1, %c0_12, %c0_13] : memref<4x16x16xf32, #tpu.memory_space<vmem>>, vector<1x16x16xf32>
    %17 = vector.shape_cast %16 : vector<1x16x16xf32> to vector<16x16xf32>
    %cst_14 = arith.constant dense<0.000000e+00> : vector<24x16xf32>
    %18 = tpu.matmul %0, %17, %cst_14 {dimension_numbers = #tpu.dot_dimension_numbers<[1], [0], [0], [1], [0, 0, 1, 1], [], []>} : vector<24x16xf32>, vector<16x16xf32>, vector<24x16xf32> -> vector<24x16xf32>
    %19 = vector.shape_cast %18 : vector<24x16xf32> to vector<3x8x16xf32>
    %cst_15 = arith.constant dense<0.000000e+00> : vector<3x8x8xf32>
    %20 = tpu.matmul %19, %1, %cst_15 {dimension_numbers = #tpu.dot_dimension_numbers<[2], [1], [1], [2], [0, 0, 0, 1, 1, 2], [0], [0]>} : vector<3x8x16xf32>, vector<3x16x8xf32>, vector<3x8x8xf32> -> vector<3x8x8xf32>
    %21 = vector.extract_strided_slice %20 {offsets = [0, 0, 0], sizes = [1, 8, 8], strides = [1, 1, 1]} : vector<3x8x8xf32> to vector<1x8x8xf32>
    %22 = vector.shape_cast %21 : vector<1x8x8xf32> to vector<8x8xf32>
    %c8_16 = arith.constant 8 : index
    %c0_17 = arith.constant 0 : index
    %23 = vector.load %arg4[%c8_16, %c0_17] : memref<32x24xf32, #tpu.memory_space<vmem>>, vector<8x8xf32>
    tpu.vector_store %arg4[%c8_16, %c0_17], %22 {strides = array<i32>} : memref<32x24xf32, #tpu.memory_space<vmem>>, vector<8x8xf32>,
    %24 = vector.extract_strided_slice %20 {offsets = [1, 0, 0], sizes = [1, 8, 8], strides = [1, 1, 1]} : vector<3x8x8xf32> to vector<1x8x8xf32>
    %25 = vector.shape_cast %24 : vector<1x8x8xf32> to vector<8x8xf32>
    %c8_18 = arith.constant 8 : index
    %c8_19 = arith.constant 8 : index
    %26 = vector.load %arg4[%c8_18, %c8_19] : memref<32x24xf32, #tpu.memory_space<vmem>>, vector<8x8xf32>
    tpu.vector_store %arg4[%c8_18, %c8_19], %25 {strides = array<i32>} : memref<32x24xf32, #tpu.memory_space<vmem>>, vector<8x8xf32>,
    %27 = vector.extract_strided_slice %20 {offsets = [2, 0, 0], sizes = [1, 8, 8], strides = [1, 1, 1]} : vector<3x8x8xf32> to vector<1x8x8xf32>
    %28 = vector.shape_cast %27 : vector<1x8x8xf32> to vector<8x8xf32>
    %c8_20 = arith.constant 8 : index
    %c16_21 = arith.constant 16 : index
    %29 = vector.load %arg4[%c8_20, %c16_21] : memref<32x24xf32, #tpu.memory_space<vmem>>, vector<8x8xf32>
    tpu.vector_store %arg4[%c8_20, %c16_21], %28 {strides = array<i32>} : memref<32x24xf32, #tpu.memory_space<vmem>>, vector<8x8xf32>,
    %c2 = arith.constant 2 : index
    %c0_22 = arith.constant 0 : index
    %c0_23 = arith.constant 0 : index
    %30 = vector.load %arg3[%c2, %c0_22, %c0_23] : memref<4x16x16xf32, #tpu.memory_space<vmem>>, vector<1x16x16xf32>
    %31 = vector.shape_cast %30 : vector<1x16x16xf32> to vector<16x16xf32>
    %cst_24 = arith.constant dense<0.000000e+00> : vector<24x16xf32>
    %32 = tpu.matmul %0, %31, %cst_24 {dimension_numbers = #tpu.dot_dimension_numbers<[1], [0], [0], [1], [0, 0, 1, 1], [], []>} : vector<24x16xf32>, vector<16x16xf32>, vector<24x16xf32> -> vector<24x16xf32>
    %33 = vector.shape_cast %32 : vector<24x16xf32> to vector<3x8x16xf32>
    %cst_25 = arith.constant dense<0.000000e+00> : vector<3x8x8xf32>
    %34 = tpu.matmul %33, %1, %cst_25 {dimension_numbers = #tpu.dot_dimension_numbers<[2], [1], [1], [2], [0, 0, 0, 1, 1, 2], [0], [0]>} : vector<3x8x16xf32>, vector<3x16x8xf32>, vector<3x8x8xf32> -> vector<3x8x8xf32>
    %35 = vector.extract_strided_slice %34 {offsets = [0, 0, 0], sizes = [1, 8, 8], strides = [1, 1, 1]} : vector<3x8x8xf32> to vector<1x8x8xf32>
    %36 = vector.shape_cast %35 : vector<1x8x8xf32> to vector<8x8xf32>
    %c16_26 = arith.constant 16 : index
    %c0_27 = arith.constant 0 : index
    %37 = vector.load %arg4[%c16_26, %c0_27] : memref<32x24xf32, #tpu.memory_space<vmem>>, vector<8x8xf32>
    tpu.vector_store %arg4[%c16_26, %c0_27], %36 {strides = array<i32>} : memref<32x24xf32, #tpu.memory_space<vmem>>, vector<8x8xf32>,
    %38 = vector.extract_strided_slice %34 {offsets = [1, 0, 0], sizes = [1, 8, 8], strides = [1, 1, 1]} : vector<3x8x8xf32> to vector<1x8x8xf32>
    %39 = vector.shape_cast %38 : vector<1x8x8xf32> to vector<8x8xf32>
    %c16_28 = arith.constant 16 : index
    %c8_29 = arith.constant 8 : index
    %40 = vector.load %arg4[%c16_28, %c8_29] : memref<32x24xf32, #tpu.memory_space<vmem>>, vector<8x8xf32>
    tpu.vector_store %arg4[%c16_28, %c8_29], %39 {strides = array<i32>} : memref<32x24xf32, #tpu.memory_space<vmem>>, vector<8x8xf32>,
    %41 = vector.extract_strided_slice %34 {offsets = [2, 0, 0], sizes = [1, 8, 8], strides = [1, 1, 1]} : vector<3x8x8xf32> to vector<1x8x8xf32>
    %42 = vector.shape_cast %41 : vector<1x8x8xf32> to vector<8x8xf32>
    %c16_30 = arith.constant 16 : index
    %c16_31 = arith.constant 16 : index
    %43 = vector.load %arg4[%c16_30, %c16_31] : memref<32x24xf32, #tpu.memory_space<vmem>>, vector<8x8xf32>
    tpu.vector_store %arg4[%c16_30, %c16_31], %42 {strides = array<i32>} : memref<32x24xf32, #tpu.memory_space<vmem>>, vector<8x8xf32>,
    %c3 = arith.constant 3 : index
    %c0_32 = arith.constant 0 : index
    %c0_33 = arith.constant 0 : index
    %44 = vector.load %arg3[%c3, %c0_32, %c0_33] : memref<4x16x16xf32, #tpu.memory_space<vmem>>, vector<1x16x16xf32>
    %45 = vector.shape_cast %44 : vector<1x16x16xf32> to vector<16x16xf32>
    %cst_34 = arith.constant dense<0.000000e+00> : vector<24x16xf32>
    %46 = tpu.matmul %0, %45, %cst_34 {dimension_numbers = #tpu.dot_dimension_numbers<[1], [0], [0], [1], [0, 0, 1, 1], [], []>} : vector<24x16xf32>, vector<16x16xf32>, vector<24x16xf32> -> vector<24x16xf32>
    %47 = vector.shape_cast %46 : vector<24x16xf32> to vector<3x8x16xf32>
    %cst_35 = arith.constant dense<0.000000e+00> : vector<3x8x8xf32>
    %48 = tpu.matmul %47, %1, %cst_35 {dimension_numbers = #tpu.dot_dimension_numbers<[2], [1], [1], [2], [0, 0, 0, 1, 1, 2], [0], [0]>} : vector<3x8x16xf32>, vector<3x16x8xf32>, vector<3x8x8xf32> -> vector<3x8x8xf32>
    %49 = vector.extract_strided_slice %48 {offsets = [0, 0, 0], sizes = [1, 8, 8], strides = [1, 1, 1]} : vector<3x8x8xf32> to vector<1x8x8xf32>
    %50 = vector.shape_cast %49 : vector<1x8x8xf32> to vector<8x8xf32>
    %c24 = arith.constant 24 : index
    %c0_36 = arith.constant 0 : index
    %51 = vector.load %arg4[%c24, %c0_36] : memref<32x24xf32, #tpu.memory_space<vmem>>, vector<8x8xf32>
    tpu.vector_store %arg4[%c24, %c0_36], %50 {strides = array<i32>} : memref<32x24xf32, #tpu.memory_space<vmem>>, vector<8x8xf32>,
    %52 = vector.extract_strided_slice %48 {offsets = [1, 0, 0], sizes = [1, 8, 8], strides = [1, 1, 1]} : vector<3x8x8xf32> to vector<1x8x8xf32>
    %53 = vector.shape_cast %52 : vector<1x8x8xf32> to vector<8x8xf32>
    %c24_37 = arith.constant 24 : index
    %c8_38 = arith.constant 8 : index
    %54 = vector.load %arg4[%c24_37, %c8_38] : memref<32x24xf32, #tpu.memory_space<vmem>>, vector<8x8xf32>
    tpu.vector_store %arg4[%c24_37, %c8_38], %53 {strides = array<i32>} : memref<32x24xf32, #tpu.memory_space<vmem>>, vector<8x8xf32>,
    %55 = vector.extract_strided_slice %48 {offsets = [2, 0, 0], sizes = [1, 8, 8], strides = [1, 1, 1]} : vector<3x8x8xf32> to vector<1x8x8xf32>
    %56 = vector.shape_cast %55 : vector<1x8x8xf32> to vector<8x8xf32>
    %c24_39 = arith.constant 24 : index
    %c16_40 = arith.constant 16 : index
    %57 = vector.load %arg4[%c24_39, %c16_40] : memref<32x24xf32, #tpu.memory_space<vmem>>, vector<8x8xf32>
    tpu.vector_store %arg4[%c24_39, %c16_40], %56 {strides = array<i32>} : memref<32x24xf32, #tpu.memory_space<vmem>>, vector<8x8xf32>,
    return
  }
  func.func @transform_0(%arg0: i32) -> (i32, i32) {
    %c0_i32 = arith.constant 0 : i32
    %c0_i32_0 = arith.constant 0 : i32
    return %arg0, %c0_i32 : i32, i32
  }
  func.func @transform_1(%arg0: i32) -> (i32, i32, i32) {
    %c0_i32 = arith.constant 0 : i32
    %c0_i32_0 = arith.constant 0 : i32
    %c0_i32_1 = arith.constant 0 : i32
    return %arg0, %c0_i32, %c0_i32_0 : i32, i32, i32
  }
  func.func @transform_2(%arg0: i32) -> (i32, i32, i32) {
    %c0_i32 = arith.constant 0 : i32
    %c0_i32_0 = arith.constant 0 : i32
    %c0_i32_1 = arith.constant 0 : i32
    %c0_i32_2 = arith.constant 0 : i32
    return %c0_i32, %c0_i32_0, %c0_i32_1 : i32, i32, i32
  }
  func.func @transform_3(%arg0: i32) -> (i32, i32) {
    %c0_i32 = arith.constant 0 : i32
    %c0_i32_0 = arith.constant 0 : i32
    return %c0_i32, %arg0 : i32, i32
  }
}

module attributes {stable_mosaic.version = 11 : i64} {
  func.func @_crop_resize_kernel(%arg0: i32, %arg1: memref<24x16xf32, #tpu.memory_space<vmem>>, %arg2: memref<3x16x8xf32, #tpu.memory_space<vmem>>, %arg3: memref<4x16x16xf32, #tpu.memory_space<vmem>>, %arg4: memref<32x24xf32, #tpu.memory_space<vmem>>) attributes {dimension_semantics = [#tpu.dimension_semantics<parallel>], iteration_bounds = array<i64: 1>, scalar_prefetch = 0 : i64, scratch_operands = 0 : i64, tpu.core_type = #tpu.core_type<tc>, window_params = [{transform_indices = @transform_0, window_bounds = array<i64: 24, 16>}, {transform_indices = @transform_1, window_bounds = array<i64: 3, 16, 8>}, {pipeline_mode = #tpu.pipeline_mode<synchronous>, transform_indices = @transform_2, window_bounds = array<i64: 4, 16, 16>}, {transform_indices = @transform_3, window_bounds = array<i64: 32, 24>}]} {
    %c0 = arith.constant 0 : index
    %c0_0 = arith.constant 0 : index
    %0 = vector.load %arg1[%c0, %c0_0] : memref<24x16xf32, #tpu.memory_space<vmem>>, vector<24x16xf32>
    %c0_1 = arith.constant 0 : index
    %c0_2 = arith.constant 0 : index
    %c0_3 = arith.constant 0 : index
    %1 = vector.load %arg2[%c0_1, %c0_2, %c0_3] : memref<3x16x8xf32, #tpu.memory_space<vmem>>, vector<3x16x8xf32>
    %c0_4 = arith.constant 0 : index
    %c0_5 = arith.constant 0 : index
    %c0_6 = arith.constant 0 : index
    %2 = vector.load %arg3[%c0_4, %c0_5, %c0_6] : memref<4x16x16xf32, #tpu.memory_space<vmem>>, vector<1x16x16xf32>
    %3 = vector.shape_cast %2 : vector<1x16x16xf32> to vector<16x16xf32>
    %cst = arith.constant dense<0.000000e+00> : vector<24x16xf32>
    %4 = tpu.matmul %0, %3, %cst {dimension_numbers = #tpu.dot_dimension_numbers<[1], [0], [0], [1], [0, 0, 1, 1], [], []>} : vector<24x16xf32>, vector<16x16xf32>, vector<24x16xf32> -> vector<24x16xf32>
    %5 = vector.shape_cast %4 : vector<24x16xf32> to vector<3x8x16xf32>
    %cst_7 = arith.constant dense<0.000000e+00> : vector<3x8x8xf32>
    %6 = tpu.matmul %5, %1, %cst_7 {dimension_numbers = #tpu.dot_dimension_numbers<[2], [1], [1], [2], [0, 0, 0, 1, 1, 2], [0], [0]>} : vector<3x8x16xf32>, vector<3x16x8xf32>, vector<3x8x8xf32> -> vector<3x8x8xf32>
    %7 = vector.extract_strided_slice %6 {offsets = [0, 0, 0], sizes = [1, 8, 8], strides = [1, 1, 1]} : vector<3x8x8xf32> to vector<1x8x8xf32>
    %8 = vector.shape_cast %7 : vector<1x8x8xf32> to vector<8x8xf32>
    %c0_8 = arith.constant 0 : index
    %c0_9 = arith.constant 0 : index
    %9 = vector.load %arg4[%c0_8, %c0_9] : memref<32x24xf32, #tpu.memory_space<vmem>>, vector<8x8xf32>
    tpu.vector_store %arg4[%c0_8, %c0_9], %8 {strides = array<i32>} : memref<32x24xf32, #tpu.memory_space<vmem>>, vector<8x8xf32>,
    %10 = vector.extract_strided_slice %6 {offsets = [1, 0, 0], sizes = [1, 8, 8], strides = [1, 1, 1]} : vector<3x8x8xf32> to vector<1x8x8xf32>
    %11 = vector.shape_cast %10 : vector<1x8x8xf32> to vector<8x8xf32>
    %c0_10 = arith.constant 0 : index
    %c8 = arith.constant 8 : index
    %12 = vector.load %arg4[%c0_10, %c8] : memref<32x24xf32, #tpu.memory_space<vmem>>, vector<8x8xf32>
    tpu.vector_store %arg4[%c0_10, %c8], %11 {strides = array<i32>} : memref<32x24xf32, #tpu.memory_space<vmem>>, vector<8x8xf32>,
    %13 = vector.extract_strided_slice %6 {offsets = [2, 0, 0], sizes = [1, 8, 8], strides = [1, 1, 1]} : vector<3x8x8xf32> to vector<1x8x8xf32>
    %14 = vector.shape_cast %13 : vector<1x8x8xf32> to vector<8x8xf32>
    %c0_11 = arith.constant 0 : index
    %c16 = arith.constant 16 : index
    %15 = vector.load %arg4[%c0_11, %c16] : memref<32x24xf32, #tpu.memory_space<vmem>>, vector<8x8xf32>
    tpu.vector_store %arg4[%c0_11, %c16], %14 {strides = array<i32>} : memref<32x24xf32, #tpu.memory_space<vmem>>, vector<8x8xf32>,
    %c1 = arith.constant 1 : index
    %c0_12 = arith.constant 0 : index
    %c0_13 = arith.constant 0 : index
    %16 = vector.load %arg3[%c1, %c0_12, %c0_13] : memref<4x16x16xf32, #tpu.memory_space<vmem>>, vector<1x16x16xf32>
    %17 = vector.shape_cast %16 : vector<1x16x16xf32> to vector<16x16xf32>
    %cst_14 = arith.constant dense<0.000000e+00> : vector<24x16xf32>
    %18 = tpu.matmul %0, %17, %cst_14 {dimension_numbers = #tpu.dot_dimension_numbers<[1], [0], [0], [1], [0, 0, 1, 1], [], []>} : vector<24x16xf32>, vector<16x16xf32>, vector<24x16xf32> -> vector<24x16xf32>
    %19 = vector.shape_cast %18 : vector<24x16xf32> to vector<3x8x16xf32>
    %cst_15 = arith.constant dense<0.000000e+00> : vector<3x8x8xf32>
    %20 = tpu.matmul %19, %1, %cst_15 {dimension_numbers = #tpu.dot_dimension_numbers<[2], [1], [1], [2], [0, 0, 0, 1, 1, 2], [0], [0]>} : vector<3x8x16xf32>, vector<3x16x8xf32>, vector<3x8x8xf32> -> vector<3x8x8xf32>
    %21 = vector.extract_strided_slice %20 {offsets = [0, 0, 0], sizes = [1, 8, 8], strides = [1, 1, 1]} : vector<3x8x8xf32> to vector<1x8x8xf32>
    %22 = vector.shape_cast %21 : vector<1x8x8xf32> to vector<8x8xf32>
    %c8_16 = arith.constant 8 : index
    %c0_17 = arith.constant 0 : index
    %23 = vector.load %arg4[%c8_16, %c0_17] : memref<32x24xf32, #tpu.memory_space<vmem>>, vector<8x8xf32>
    tpu.vector_store %arg4[%c8_16, %c0_17], %22 {strides = array<i32>} : memref<32x24xf32, #tpu.memory_space<vmem>>, vector<8x8xf32>,
    %24 = vector.extract_strided_slice %20 {offsets = [1, 0, 0], sizes = [1, 8, 8], strides = [1, 1, 1]} : vector<3x8x8xf32> to vector<1x8x8xf32>
    %25 = vector.shape_cast %24 : vector<1x8x8xf32> to vector<8x8xf32>
    %c8_18 = arith.constant 8 : index
    %c8_19 = arith.constant 8 : index
    %26 = vector.load %arg4[%c8_18, %c8_19] : memref<32x24xf32, #tpu.memory_space<vmem>>, vector<8x8xf32>
    tpu.vector_store %arg4[%c8_18, %c8_19], %25 {strides = array<i32>} : memref<32x24xf32, #tpu.memory_space<vmem>>, vector<8x8xf32>,
    %27 = vector.extract_strided_slice %20 {offsets = [2, 0, 0], sizes = [1, 8, 8], strides = [1, 1, 1]} : vector<3x8x8xf32> to vector<1x8x8xf32>
    %28 = vector.shape_cast %27 : vector<1x8x8xf32> to vector<8x8xf32>
    %c8_20 = arith.constant 8 : index
    %c16_21 = arith.constant 16 : index
    %29 = vector.load %arg4[%c8_20, %c16_21] : memref<32x24xf32, #tpu.memory_space<vmem>>, vector<8x8xf32>
    tpu.vector_store %arg4[%c8_20, %c16_21], %28 {strides = array<i32>} : memref<32x24xf32, #tpu.memory_space<vmem>>, vector<8x8xf32>,
    %c2 = arith.constant 2 : index
    %c0_22 = arith.constant 0 : index
    %c0_23 = arith.constant 0 : index
    %30 = vector.load %arg3[%c2, %c0_22, %c0_23] : memref<4x16x16xf32, #tpu.memory_space<vmem>>, vector<1x16x16xf32>
    %31 = vector.shape_cast %30 : vector<1x16x16xf32> to vector<16x16xf32>
    %cst_24 = arith.constant dense<0.000000e+00> : vector<24x16xf32>
    %32 = tpu.matmul %0, %31, %cst_24 {dimension_numbers = #tpu.dot_dimension_numbers<[1], [0], [0], [1], [0, 0, 1, 1], [], []>} : vector<24x16xf32>, vector<16x16xf32>, vector<24x16xf32> -> vector<24x16xf32>
    %33 = vector.shape_cast %32 : vector<24x16xf32> to vector<3x8x16xf32>
    %cst_25 = arith.constant dense<0.000000e+00> : vector<3x8x8xf32>
    %34 = tpu.matmul %33, %1, %cst_25 {dimension_numbers = #tpu.dot_dimension_numbers<[2], [1], [1], [2], [0, 0, 0, 1, 1, 2], [0], [0]>} : vector<3x8x16xf32>, vector<3x16x8xf32>, vector<3x8x8xf32> -> vector<3x8x8xf32>
    %35 = vector.extract_strided_slice %34 {offsets = [0, 0, 0], sizes = [1, 8, 8], strides = [1, 1, 1]} : vector<3x8x8xf32> to vector<1x8x8xf32>
    %36 = vector.shape_cast %35 : vector<1x8x8xf32> to vector<8x8xf32>
    %c16_26 = arith.constant 16 : index
    %c0_27 = arith.constant 0 : index
    %37 = vector.load %arg4[%c16_26, %c0_27] : memref<32x24xf32, #tpu.memory_space<vmem>>, vector<8x8xf32>
    tpu.vector_store %arg4[%c16_26, %c0_27], %36 {strides = array<i32>} : memref<32x24xf32, #tpu.memory_space<vmem>>, vector<8x8xf32>,
    %38 = vector.extract_strided_slice %34 {offsets = [1, 0, 0], sizes = [1, 8, 8], strides = [1, 1, 1]} : vector<3x8x8xf32> to vector<1x8x8xf32>
    %39 = vector.shape_cast %38 : vector<1x8x8xf32> to vector<8x8xf32>
    %c16_28 = arith.constant 16 : index
    %c8_29 = arith.constant 8 : index
    %40 = vector.load %arg4[%c16_28, %c8_29] : memref<32x24xf32, #tpu.memory_space<vmem>>, vector<8x8xf32>
    tpu.vector_store %arg4[%c16_28, %c8_29], %39 {strides = array<i32>} : memref<32x24xf32, #tpu.memory_space<vmem>>, vector<8x8xf32>,
    %41 = vector.extract_strided_slice %34 {offsets = [2, 0, 0], sizes = [1, 8, 8], strides = [1, 1, 1]} : vector<3x8x8xf32> to vector<1x8x8xf32>
    %42 = vector.shape_cast %41 : vector<1x8x8xf32> to vector<8x8xf32>
    %c16_30 = arith.constant 16 : index
    %c16_31 = arith.constant 16 : index
    %43 = vector.load %arg4[%c16_30, %c16_31] : memref<32x24xf32, #tpu.memory_space<vmem>>, vector<8x8xf32>
    tpu.vector_store %arg4[%c16_30, %c16_31], %42 {strides = array<i32>} : memref<32x24xf32, #tpu.memory_space<vmem>>, vector<8x8xf32>,
    %c3 = arith.constant 3 : index
    %c0_32 = arith.constant 0 : index
    %c0_33 = arith.constant 0 : index
    %44 = vector.load %arg3[%c3, %c0_32, %c0_33] : memref<4x16x16xf32, #tpu.memory_space<vmem>>, vector<1x16x16xf32>
    %45 = vector.shape_cast %44 : vector<1x16x16xf32> to vector<16x16xf32>
    %cst_34 = arith.constant dense<0.000000e+00> : vector<24x16xf32>
    %46 = tpu.matmul %0, %45, %cst_34 {dimension_numbers = #tpu.dot_dimension_numbers<[1], [0], [0], [1], [0, 0, 1, 1], [], []>} : vector<24x16xf32>, vector<16x16xf32>, vector<24x16xf32> -> vector<24x16xf32>
    %47 = vector.shape_cast %46 : vector<24x16xf32> to vector<3x8x16xf32>
    %cst_35 = arith.constant dense<0.000000e+00> : vector<3x8x8xf32>
    %48 = tpu.matmul %47, %1, %cst_35 {dimension_numbers = #tpu.dot_dimension_numbers<[2], [1], [1], [2], [0, 0, 0, 1, 1, 2], [0], [0]>} : vector<3x8x16xf32>, vector<3x16x8xf32>, vector<3x8x8xf32> -> vector<3x8x8xf32>
    %49 = vector.extract_strided_slice %48 {offsets = [0, 0, 0], sizes = [1, 8, 8], strides = [1, 1, 1]} : vector<3x8x8xf32> to vector<1x8x8xf32>
    %50 = vector.shape_cast %49 : vector<1x8x8xf32> to vector<8x8xf32>
    %c24 = arith.constant 24 : index
    %c0_36 = arith.constant 0 : index
    %51 = vector.load %arg4[%c24, %c0_36] : memref<32x24xf32, #tpu.memory_space<vmem>>, vector<8x8xf32>
    tpu.vector_store %arg4[%c24, %c0_36], %50 {strides = array<i32>} : memref<32x24xf32, #tpu.memory_space<vmem>>, vector<8x8xf32>,
    %52 = vector.extract_strided_slice %48 {offsets = [1, 0, 0], sizes = [1, 8, 8], strides = [1, 1, 1]} : vector<3x8x8xf32> to vector<1x8x8xf32>
    %53 = vector.shape_cast %52 : vector<1x8x8xf32> to vector<8x8xf32>
    %c24_37 = arith.constant 24 : index
    %c8_38 = arith.constant 8 : index
    %54 = vector.load %arg4[%c24_37, %c8_38] : memref<32x24xf32, #tpu.memory_space<vmem>>, vector<8x8xf32>
    tpu.vector_store %arg4[%c24_37, %c8_38], %53 {strides = array<i32>} : memref<32x24xf32, #tpu.memory_space<vmem>>, vector<8x8xf32>,
    %55 = vector.extract_strided_slice %48 {offsets = [2, 0, 0], sizes = [1, 8, 8], strides = [1, 1, 1]} : vector<3x8x8xf32> to vector<1x8x8xf32>
    %56 = vector.shape_cast %55 : vector<1x8x8xf32> to vector<8x8xf32>
    %c24_39 = arith.constant 24 : index
    %c16_40 = arith.constant 16 : index
    %57 = vector.load %arg4[%c24_39, %c16_40] : memref<32x24xf32, #tpu.memory_space<vmem>>, vector<8x8xf32>
    tpu.vector_store %arg4[%c24_39, %c16_40], %56 {strides = array<i32>} : memref<32x24xf32, #tpu.memory_space<vmem>>, vector<8x8xf32>,
    return
  }
  func.func @transform_0(%arg0: i32) -> (i32, i32) {
    %c0_i32 = arith.constant 0 : i32
    %c0_i32_0 = arith.constant 0 : i32
    return %arg0, %c0_i32 : i32, i32
  }
  func.func @transform_1(%arg0: i32) -> (i32, i32, i32) {
    %c0_i32 = arith.constant 0 : i32
    %c0_i32_0 = arith.constant 0 : i32
    %c0_i32_1 = arith.constant 0 : i32
    return %arg0, %c0_i32, %c0_i32_0 : i32, i32, i32
  }
  func.func @transform_2(%arg0: i32) -> (i32, i32, i32) {
    %c0_i32 = arith.constant 0 : i32
    %c0_i32_0 = arith.constant 0 : i32
    %c0_i32_1 = arith.constant 0 : i32
    %c0_i32_2 = arith.constant 0 : i32
    return %c0_i32, %c0_i32_0, %c0_i32_1 : i32, i32, i32
  }
  func.func @transform_3(%arg0: i32) -> (i32, i32) {
    %c0_i32 = arith.constant 0 : i32
    %c0_i32_0 = arith.constant 0 : i32
    return %c0_i32, %arg0 : i32, i32
  }
}

</mosaic_0001>

<llo_original>
// kernel: tpu_custom_call.1
$region0: #{tpu_custom_call.1}
  #allocation0 [shape = 'u32[]', space=smem, size = 0x4, offset = 0x4, fixed_abs, tag = 'smem constant byte address 0x4 - core index']
  #allocation1 [shape = 'u32[144,128]{1,0:T(1,128)}', space=vmem, size = 0x12000, scoped, tag = 'internal scratch']
  %s0 = inlined_call_operand.vmem [shape: f32[24,16], index: 0, kind: input, shape index: {}]
  %s1 = inlined_call_operand.vmem [shape: f32[3,16,8], index: 1, kind: input, shape index: {}]
  %s2 = inlined_call_operand.vmem [shape: f32[4,16,16], index: 2, kind: input, shape index: {}]
  %s3 = inlined_call_operand.vmem [shape: f32[32,24], index: 3, kind: output, shape index: {}]
  %s4 = sld [smem:[#allocation0]]
  $region22: #{tpu_custom_call.1} parent=0
    _
  %s6 = ssub.s32 1, %s4
  %s7 = scalar_select 0, %s6, %s4
  // Predicated region
  $region2: #{tpu_custom_call.1} parent=0 // pred_check
    _
  $region3: #{tpu_custom_call.1} parent=0 // pred_check_branch
    %9 = sbr.rel (0) target = $region5
  $region4: #{tpu_custom_call.1} parent=0 // pred_region
    _
  $region5: #{tpu_custom_call.1} parent=0 // pred_fallthru
    _
  // Predicated region
  $region6: #{tpu_custom_call.1} parent=0 // pred_check
    _
  $region7: #{tpu_custom_call.1} parent=0 // pred_check_branch
    %11 = sbr.rel (0) target = $region9
  $region8: #{tpu_custom_call.1} parent=0 // pred_region
    _
  $region9: #{tpu_custom_call.1} parent=0 // pred_fallthru
    _
  // Predicated region
  $region10: #{tpu_custom_call.1} parent=0 // pred_check
    _
  $region11: #{tpu_custom_call.1} parent=0 // pred_check_branch
    %13 = sbr.rel (0) target = $region13
  $region12: #{tpu_custom_call.1} parent=0 // pred_region
    _
  $region13: #{tpu_custom_call.1} parent=0 // pred_fallthru
    _
  %v14 = vld [vmem:[%s0] sm:$0xff]
  %v15 = vld [vmem:[%s0 + $0x8] sm:$0xff]
  %v16 = vld [vmem:[%s0 + $0x10] sm:$0xff]
  %v17 = vld [vmem:[%s1] sm:$0xff]
  %v18 = vld [vmem:[%s1 + $0x8] sm:$0xff]
  %v19 = vld [vmem:[%s1 + $0x10] sm:$0xff]
  %v20 = vld [vmem:[%s1 + $0x18] sm:$0xff]
  %v21 = vld [vmem:[%s1 + $0x20] sm:$0xff]
  %v22 = vld [vmem:[%s1 + $0x28] sm:$0xff]
  %v23 = vld [vmem:[%s2] sm:$0xff]
  %v24 = vld [vmem:[%s2 + $0x8] sm:$0xff]
  %vm25 = vcmask 130048
  %v27 = vsel %vm25, %v14, 0
  %v30 = vsel %vm25, %v15, 0
  %v33 = vsel %vm25, %v16, 0
  %35 = vmatprep.subr.mxu0 0.0
  %36 = vmatpush1.msra.mxu0 %v23
  %37 = vmatprep.subr.mxu0 0.0
  %38 = vmatpush1.msra.mxu0 %v24
  %39 = vmatprep.subr.mxu0 0.0
  %40 = vmatpush1.msra.mxu0 0.0
  %41 = vmatprep.subr.mxu0 0.0
  %42 = vmatpush1.msra.mxu0 0.0
  %43 = vmatprep.subr.mxu0 0.0
  %44 = vmatpush1.msra.mxu0 0.0
  %45 = vmatprep.subr.mxu0 0.0
  %46 = vmatpush1.msra.mxu0 0.0
  %47 = vmatprep.subr.mxu0 0.0
  %48 = vmatpush1.msra.mxu0 0.0
  %49 = vmatprep.subr.mxu0 0.0
  %50 = vmatpush1.msra.mxu0 0.0
  %51 = vmatprep.subr.mxu0 0.0
  %52 = vmatpush1.msra.mxu0 0.0
  %53 = vmatprep.subr.mxu0 0.0
  %54 = vmatpush1.msra.mxu0 0.0
  %55 = vmatprep.subr.mxu0 0.0
  %56 = vmatpush1.msra.mxu0 0.0
  %57 = vmatprep.subr.mxu0 0.0
  %58 = vmatpush1.msra.mxu0 0.0
  %59 = vmatprep.subr.mxu0 0.0
  %60 = vmatpush1.msra.mxu0 0.0
  %61 = vmatprep.subr.mxu0 0.0
  %62 = vmatpush1.msra.mxu0 0.0
  %63 = vmatprep.subr.mxu0 0.0
  %64 = vmatpush1.msra.mxu0 0.0
  %65 = vmatprep.subr.mxu0 0.0
  %66 = vmatpush1.msra.mxu0 0.0
  %67 = vmatprep.subr.mxu0 0.0
  %68 = vmatpush1.msra.mxu0 0.0
  %69 = vmatprep.subr.mxu0 0.0
  %70 = vmatpush1.msra.mxu0 0.0
  %71 = vmatprep.subr.mxu0 0.0
  %72 = vmatpush1.msra.mxu0 0.0
  %73 = vmatprep.subr.mxu0 0.0
  %74 = vmatpush1.msra.mxu0 0.0
  %75 = vmatprep.subr.mxu0 0.0
  %76 = vmatpush1.msra.mxu0 0.0
  %77 = vmatprep.subr.mxu0 0.0
  %78 = vmatpush1.msra.mxu0 0.0
  %79 = vmatprep.subr.mxu0 0.0
  %80 = vmatpush1.msra.mxu0 0.0
  %81 = vmatprep.subr.mxu0 0.0
  %82 = vmatpush1.msra.mxu0 0.0
  %83 = vmatprep.subr.mxu0 0.0
  %84 = vmatpush1.msra.mxu0 0.0
  %85 = vmatprep.subr.mxu0 0.0
  %86 = vmatpush1.msra.mxu0 0.0
  %87 = vmatprep.subr.mxu0 0.0
  %88 = vmatpush1.msra.mxu0 0.0
  %89 = vmatprep.subr.mxu0 0.0
  %90 = vmatpush1.msra.mxu0 0.0
  %91 = vmatprep.subr.mxu0 0.0
  %92 = vmatpush1.msra.mxu0 0.0
  %93 = vmatprep.subr.mxu0 0.0
  %94 = vmatpush1.msra.mxu0 0.0
  %95 = vmatprep.subr.mxu0 0.0
  %96 = vmatpush1.msra.mxu0 0.0
  %97 = vmatprep.subr.mxu0 0.0
  %98 = vmatpush1.msra.mxu0 0.0
  %99 = vmatprep.mubr.f32.mxu0 0.0
  %100 = vmatmul.mubr.f32.gmra.mrb[0].mxu0 %v27
  %v101 = vpop.f32.mrb[0].mxu0
  %v102 = vadd.f32 0.0, %v101
  %v103 = vpop.f32.mrb[0].mxu0
  %104 = vmatprep.mubr.f32.mxu0 0.0
  %105 = vmatmul.mubr.f32.gmra.mrb[0].mxu0 %v30
  %v106 = vpop.f32.mrb[0].mxu0
  %v107 = vadd.f32 0.0, %v106
  %v108 = vpop.f32.mrb[0].mxu0
  %109 = vmatprep.mubr.f32.mxu0 0.0
  %110 = vmatmul.mubr.f32.gmra.mrb[0].mxu0 %v33
  %v111 = vpop.f32.mrb[0].mxu0
  %v112 = vadd.f32 0.0, %v111
  %v113 = vpop.f32.mrb[0].mxu0
  %114 = vdwg.mxu0
  %v116 = vsel %vm25, %v102, 0
  %118 = vmatprep.subr.mxu0 0.0
  %119 = vmatpush1.msra.mxu0 %v17
  %120 = vmatprep.subr.mxu0 0.0
  %121 = vmatpush1.msra.mxu0 %v18
  %122 = vmatprep.subr.mxu0 0.0
  %123 = vmatpush1.msra.mxu0 0.0
  %124 = vmatprep.subr.mxu0 0.0
  %125 = vmatpush1.msra.mxu0 0.0
  %126 = vmatprep.subr.mxu0 0.0
  %127 = vmatpush1.msra.mxu0 0.0
  %128 = vmatprep.subr.mxu0 0.0
  %129 = vmatpush1.msra.mxu0 0.0
  %130 = vmatprep.subr.mxu0 0.0
  %131 = vmatpush1.msra.mxu0 0.0
  %132 = vmatprep.subr.mxu0 0.0
  %133 = vmatpush1.msra.mxu0 0.0
  %134 = vmatprep.subr.mxu0 0.0
  %135 = vmatpush1.msra.mxu0 0.0
  %136 = vmatprep.subr.mxu0 0.0
  %137 = vmatpush1.msra.mxu0 0.0
  %138 = vmatprep.subr.mxu0 0.0
  %139 = vmatpush1.msra.mxu0 0.0
  %140 = vmatprep.subr.mxu0 0.0
  %141 = vmatpush1.msra.mxu0 0.0
  %142 = vmatprep.subr.mxu0 0.0
  %143 = vmatpush1.msra.mxu0 0.0
  %144 = vmatprep.subr.mxu0 0.0
  %145 = vmatpush1.msra.mxu0 0.0
  %146 = vmatprep.subr.mxu0 0.0
  %147 = vmatpush1.msra.mxu0 0.0
  %148 = vmatprep.subr.mxu0 0.0
  %149 = vmatpush1.msra.mxu0 0.0
  %150 = vmatprep.subr.mxu0 0.0
  %151 = vmatpush1.msra.mxu0 0.0
  %152 = vmatprep.subr.mxu0 0.0
  %153 = vmatpush1.msra.mxu0 0.0
  %154 = vmatprep.subr.mxu0 0.0
  %155 = vmatpush1.msra.mxu0 0.0
  %156 = vmatprep.subr.mxu0 0.0
  %157 = vmatpush1.msra.mxu0 0.0
  %158 = vmatprep.subr.mxu0 0.0
  %159 = vmatpush1.msra.mxu0 0.0
  %160 = vmatprep.subr.mxu0 0.0
  %161 = vmatpush1.msra.mxu0 0.0
  %162 = vmatprep.subr.mxu0 0.0
  %163 = vmatpush1.msra.mxu0 0.0
  %164 = vmatprep.subr.mxu0 0.0
  %165 = vmatpush1.msra.mxu0 0.0
  %166 = vmatprep.subr.mxu0 0.0
  %167 = vmatpush1.msra.mxu0 0.0
  %168 = vmatprep.subr.mxu0 0.0
  %169 = vmatpush1.msra.mxu0 0.0
  %170 = vmatprep.subr.mxu0 0.0
  %171 = vmatpush1.msra.mxu0 0.0
  %172 = vmatprep.subr.mxu0 0.0
  %173 = vmatpush1.msra.mxu0 0.0
  %174 = vmatprep.subr.mxu0 0.0
  %175 = vmatpush1.msra.mxu0 0.0
  %176 = vmatprep.subr.mxu0 0.0
  %177 = vmatpush1.msra.mxu0 0.0
  %178 = vmatprep.subr.mxu0 0.0
  %179 = vmatpush1.msra.mxu0 0.0
  %180 = vmatprep.subr.mxu0 0.0
  %181 = vmatpush1.msra.mxu0 0.0
  %182 = vmatprep.mubr.f32.mxu0 0.0
  %183 = vmatmul.mubr.f32.gmra.mrb[0].mxu0 %v116
  %v184 = vpop.f32.mrb[0].mxu0
  %v185 = vadd.f32 0.0, %v184
  %v186 = vpop.f32.mrb[0].mxu0
  %187 = vdwg.mxu0
  %v189 = vsel %vm25, %v107, 0
  %191 = vmatprep.subr.mxu0 0.0
  %192 = vmatpush1.msra.mxu0 %v19
  %193 = vmatprep.subr.mxu0 0.0
  %194 = vmatpush1.msra.mxu0 %v20
  %195 = vmatprep.subr.mxu0 0.0
  %196 = vmatpush1.msra.mxu0 0.0
  %197 = vmatprep.subr.mxu0 0.0
  %198 = vmatpush1.msra.mxu0 0.0
  %199 = vmatprep.subr.mxu0 0.0
  %200 = vmatpush1.msra.mxu0 0.0
  %201 = vmatprep.subr.mxu0 0.0
  %202 = vmatpush1.msra.mxu0 0.0
  %203 = vmatprep.subr.mxu0 0.0
  %204 = vmatpush1.msra.mxu0 0.0
  %205 = vmatprep.subr.mxu0 0.0
  %206 = vmatpush1.msra.mxu0 0.0
  %207 = vmatprep.subr.mxu0 0.0
  %208 = vmatpush1.msra.mxu0 0.0
  %209 = vmatprep.subr.mxu0 0.0
  %210 = vmatpush1.msra.mxu0 0.0
  %211 = vmatprep.subr.mxu0 0.0
  %212 = vmatpush1.msra.mxu0 0.0
  %213 = vmatprep.subr.mxu0 0.0
  %214 = vmatpush1.msra.mxu0 0.0
  %215 = vmatprep.subr.mxu0 0.0
  %216 = vmatpush1.msra.mxu0 0.0
  %217 = vmatprep.subr.mxu0 0.0
  %218 = vmatpush1.msra.mxu0 0.0
  %219 = vmatprep.subr.mxu0 0.0
  %220 = vmatpush1.msra.mxu0 0.0
  %221 = vmatprep.subr.mxu0 0.0
  %222 = vmatpush1.msra.mxu0 0.0
  %223 = vmatprep.subr.mxu0 0.0
  %224 = vmatpush1.msra.mxu0 0.0
  %225 = vmatprep.subr.mxu0 0.0
  %226 = vmatpush1.msra.mxu0 0.0
  %227 = vmatprep.subr.mxu0 0.0
  %228 = vmatpush1.msra.mxu0 0.0
  %229 = vmatprep.subr.mxu0 0.0
  %230 = vmatpush1.msra.mxu0 0.0
  %231 = vmatprep.subr.mxu0 0.0
  %232 = vmatpush1.msra.mxu0 0.0
  %233 = vmatprep.subr.mxu0 0.0
  %234 = vmatpush1.msra.mxu0 0.0
  %235 = vmatprep.subr.mxu0 0.0
  %236 = vmatpush1.msra.mxu0 0.0
  %237 = vmatprep.subr.mxu0 0.0
  %238 = vmatpush1.msra.mxu0 0.0
  %239 = vmatprep.subr.mxu0 0.0
  %240 = vmatpush1.msra.mxu0 0.0
  %241 = vmatprep.subr.mxu0 0.0
  %242 = vmatpush1.msra.mxu0 0.0
  %243 = vmatprep.subr.mxu0 0.0
  %244 = vmatpush1.msra.mxu0 0.0
  %245 = vmatprep.subr.mxu0 0.0
  %246 = vmatpush1.msra.mxu0 0.0
  %247 = vmatprep.subr.mxu0 0.0
  %248 = vmatpush1.msra.mxu0 0.0
  %249 = vmatprep.subr.mxu0 0.0
  %250 = vmatpush1.msra.mxu0 0.0
  %251 = vmatprep.subr.mxu0 0.0
  %252 = vmatpush1.msra.mxu0 0.0
  %253 = vmatprep.subr.mxu0 0.0
  %254 = vmatpush1.msra.mxu0 0.0
  %255 = vmatprep.mubr.f32.mxu0 0.0
  %256 = vmatmul.mubr.f32.gmra.mrb[0].mxu0 %v189
  %v257 = vpop.f32.mrb[0].mxu0
  %v258 = vadd.f32 0.0, %v257
  %v259 = vpop.f32.mrb[0].mxu0
  %260 = vdwg.mxu0
  %v262 = vsel %vm25, %v112, 0
  %264 = vmatprep.subr.mxu0 0.0
  %265 = vmatpush1.msra.mxu0 %v21
  %266 = vmatprep.subr.mxu0 0.0
  %267 = vmatpush1.msra.mxu0 %v22
  %268 = vmatprep.subr.mxu0 0.0
  %269 = vmatpush1.msra.mxu0 0.0
  %270 = vmatprep.subr.mxu0 0.0
  %271 = vmatpush1.msra.mxu0 0.0
  %272 = vmatprep.subr.mxu0 0.0
  %273 = vmatpush1.msra.mxu0 0.0
  %274 = vmatprep.subr.mxu0 0.0
  %275 = vmatpush1.msra.mxu0 0.0
  %276 = vmatprep.subr.mxu0 0.0
  %277 = vmatpush1.msra.mxu0 0.0
  %278 = vmatprep.subr.mxu0 0.0
  %279 = vmatpush1.msra.mxu0 0.0
  %280 = vmatprep.subr.mxu0 0.0
  %281 = vmatpush1.msra.mxu0 0.0
  %282 = vmatprep.subr.mxu0 0.0
  %283 = vmatpush1.msra.mxu0 0.0
  %284 = vmatprep.subr.mxu0 0.0
  %285 = vmatpush1.msra.mxu0 0.0
  %286 = vmatprep.subr.mxu0 0.0
  %287 = vmatpush1.msra.mxu0 0.0
  %288 = vmatprep.subr.mxu0 0.0
  %289 = vmatpush1.msra.mxu0 0.0
  %290 = vmatprep.subr.mxu0 0.0
  %291 = vmatpush1.msra.mxu0 0.0
  %292 = vmatprep.subr.mxu0 0.0
  %293 = vmatpush1.msra.mxu0 0.0
  %294 = vmatprep.subr.mxu0 0.0
  %295 = vmatpush1.msra.mxu0 0.0
  %296 = vmatprep.subr.mxu0 0.0
  %297 = vmatpush1.msra.mxu0 0.0
  %298 = vmatprep.subr.mxu0 0.0
  %299 = vmatpush1.msra.mxu0 0.0
  %300 = vmatprep.subr.mxu0 0.0
  %301 = vmatpush1.msra.mxu0 0.0
  %302 = vmatprep.subr.mxu0 0.0
  %303 = vmatpush1.msra.mxu0 0.0
  %304 = vmatprep.subr.mxu0 0.0
  %305 = vmatpush1.msra.mxu0 0.0
  %306 = vmatprep.subr.mxu0 0.0
  %307 = vmatpush1.msra.mxu0 0.0
  %308 = vmatprep.subr.mxu0 0.0
  %309 = vmatpush1.msra.mxu0 0.0
  %310 = vmatprep.subr.mxu0 0.0
  %311 = vmatpush1.msra.mxu0 0.0
  %312 = vmatprep.subr.mxu0 0.0
  %313 = vmatpush1.msra.mxu0 0.0
  %314 = vmatprep.subr.mxu0 0.0
  %315 = vmatpush1.msra.mxu0 0.0
  %316 = vmatprep.subr.mxu0 0.0
  %317 = vmatpush1.msra.mxu0 0.0
  %318 = vmatprep.subr.mxu0 0.0
  %319 = vmatpush1.msra.mxu0 0.0
  %320 = vmatprep.subr.mxu0 0.0
  %321 = vmatpush1.msra.mxu0 0.0
  %322 = vmatprep.subr.mxu0 0.0
  %323 = vmatpush1.msra.mxu0 0.0
  %324 = vmatprep.subr.mxu0 0.0
  %325 = vmatpush1.msra.mxu0 0.0
  %326 = vmatprep.subr.mxu0 0.0
  %327 = vmatpush1.msra.mxu0 0.0
  %328 = vmatprep.mubr.f32.mxu0 0.0
  %329 = vmatmul.mubr.f32.gmra.mrb[0].mxu0 %v262
  %v330 = vpop.f32.mrb[0].mxu0
  %v331 = vadd.f32 0.0, %v330
  %v332 = vpop.f32.mrb[0].mxu0
  %333 = vdwg.mxu0
  %vm334 = vcmask 64512
  %335 = vst.msk [vmem:[%s3] sm:$0xff] %vm334, %v185
  %337 = vrot.lane.b32.xlu0 %v258, 8
  %v338 = vpop.permute.xlu0 %337
  %vm340 = vcmask 130112
  %341 = vst.msk [vmem:[%s3] sm:$0xff] %vm340, %v338
  %343 = vrot.lane.b32.xlu0 %v331, 16
  %v344 = vpop.permute.xlu0 %343
  %vm346 = vcmask 195712
  %347 = vst.msk [vmem:[%s3] sm:$0xff] %vm346, %v344
  %s348 = scalar_lea.vmem %s2, 16
  %v349 = vld [vmem:[%s348] sm:$0xff]
  %v350 = vld [vmem:[%s348 + $0x8] sm:$0xff]
  %351 = vmatprep.subr.mxu0 0.0
  %352 = vmatpush1.msra.mxu0 %v349
  %353 = vmatprep.subr.mxu0 0.0
  %354 = vmatpush1.msra.mxu0 %v350
  %355 = vmatprep.subr.mxu0 0.0
  %356 = vmatpush1.msra.mxu0 0.0
  %357 = vmatprep.subr.mxu0 0.0
  %358 = vmatpush1.msra.mxu0 0.0
  %359 = vmatprep.subr.mxu0 0.0
  %360 = vmatpush1.msra.mxu0 0.0
  %361 = vmatprep.subr.mxu0 0.0
  %362 = vmatpush1.msra.mxu0 0.0
  %363 = vmatprep.subr.mxu0 0.0
  %364 = vmatpush1.msra.mxu0 0.0
  %365 = vmatprep.subr.mxu0 0.0
  %366 = vmatpush1.msra.mxu0 0.0
  %367 = vmatprep.subr.mxu0 0.0
  %368 = vmatpush1.msra.mxu0 0.0
  %369 = vmatprep.subr.mxu0 0.0
  %370 = vmatpush1.msra.mxu0 0.0
  %371 = vmatprep.subr.mxu0 0.0
  %372 = vmatpush1.msra.mxu0 0.0
  %373 = vmatprep.subr.mxu0 0.0
  %374 = vmatpush1.msra.mxu0 0.0
  %375 = vmatprep.subr.mxu0 0.0
  %376 = vmatpush1.msra.mxu0 0.0
  %377 = vmatprep.subr.mxu0 0.0
  %378 = vmatpush1.msra.mxu0 0.0
  %379 = vmatprep.subr.mxu0 0.0
  %380 = vmatpush1.msra.mxu0 0.0
  %381 = vmatprep.subr.mxu0 0.0
  %382 = vmatpush1.msra.mxu0 0.0
  %383 = vmatprep.subr.mxu0 0.0
  %384 = vmatpush1.msra.mxu0 0.0
  %385 = vmatprep.subr.mxu0 0.0
  %386 = vmatpush1.msra.mxu0 0.0
  %387 = vmatprep.subr.mxu0 0.0
  %388 = vmatpush1.msra.mxu0 0.0
  %389 = vmatprep.subr.mxu0 0.0
  %390 = vmatpush1.msra.mxu0 0.0
  %391 = vmatprep.subr.mxu0 0.0
  %392 = vmatpush1.msra.mxu0 0.0
  %393 = vmatprep.subr.mxu0 0.0
  %394 = vmatpush1.msra.mxu0 0.0
  %395 = vmatprep.subr.mxu0 0.0
  %396 = vmatpush1.msra.mxu0 0.0
  %397 = vmatprep.subr.mxu0 0.0
  %398 = vmatpush1.msra.mxu0 0.0
  %399 = vmatprep.subr.mxu0 0.0
  %400 = vmatpush1.msra.mxu0 0.0
  %401 = vmatprep.subr.mxu0 0.0
  %402 = vmatpush1.msra.mxu0 0.0
  %403 = vmatprep.subr.mxu0 0.0
  %404 = vmatpush1.msra.mxu0 0.0
  %405 = vmatprep.subr.mxu0 0.0
  %406 = vmatpush1.msra.mxu0 0.0
  %407 = vmatprep.subr.mxu0 0.0
  %408 = vmatpush1.msra.mxu0 0.0
  %409 = vmatprep.subr.mxu0 0.0
  %410 = vmatpush1.msra.mxu0 0.0
  %411 = vmatprep.subr.mxu0 0.0
  %412 = vmatpush1.msra.mxu0 0.0
  %413 = vmatprep.subr.mxu0 0.0
  %414 = vmatpush1.msra.mxu0 0.0
  %415 = vmatprep.mubr.f32.mxu0 0.0
  %416 = vmatmul.mubr.f32.gmra.mrb[0].mxu0 %v27
  %v417 = vpop.f32.mrb[0].mxu0
  %v418 = vadd.f32 0.0, %v417
  %v419 = vpop.f32.mrb[0].mxu0
  %420 = vmatprep.mubr.f32.mxu0 0.0
  %421 = vmatmul.mubr.f32.gmra.mrb[0].mxu0 %v30
  %v422 = vpop.f32.mrb[0].mxu0
  %v423 = vadd.f32 0.0, %v422
  %v424 = vpop.f32.mrb[0].mxu0
  %425 = vmatprep.mubr.f32.mxu0 0.0
  %426 = vmatmul.mubr.f32.gmra.mrb[0].mxu0 %v33
  %v427 = vpop.f32.mrb[0].mxu0
  %v428 = vadd.f32 0.0, %v427
  %v429 = vpop.f32.mrb[0].mxu0
  %430 = vdwg.mxu0
  %v432 = vsel %vm25, %v418, 0
  %434 = vmatprep.subr.mxu0 0.0
  %435 = vmatpush1.msra.mxu0 %v17
  %436 = vmatprep.subr.mxu0 0.0
  %437 = vmatpush1.msra.mxu0 %v18
  %438 = vmatprep.subr.mxu0 0.0
  %439 = vmatpush1.msra.mxu0 0.0
  %440 = vmatprep.subr.mxu0 0.0
  %441 = vmatpush1.msra.mxu0 0.0
  %442 = vmatprep.subr.mxu0 0.0
  %443 = vmatpush1.msra.mxu0 0.0
  %444 = vmatprep.subr.mxu0 0.0
  %445 = vmatpush1.msra.mxu0 0.0
  %446 = vmatprep.subr.mxu0 0.0
  %447 = vmatpush1.msra.mxu0 0.0
  %448 = vmatprep.subr.mxu0 0.0
  %449 = vmatpush1.msra.mxu0 0.0
  %450 = vmatprep.subr.mxu0 0.0
  %451 = vmatpush1.msra.mxu0 0.0
  %452 = vmatprep.subr.mxu0 0.0
  %453 = vmatpush1.msra.mxu0 0.0
  %454 = vmatprep.subr.mxu0 0.0
  %455 = vmatpush1.msra.mxu0 0.0
  %456 = vmatprep.subr.mxu0 0.0
  %457 = vmatpush1.msra.mxu0 0.0
  %458 = vmatprep.subr.mxu0 0.0
  %459 = vmatpush1.msra.mxu0 0.0
  %460 = vmatprep.subr.mxu0 0.0
  %461 = vmatpush1.msra.mxu0 0.0
  %462 = vmatprep.subr.mxu0 0.0
  %463 = vmatpush1.msra.mxu0 0.0
  %464 = vmatprep.subr.mxu0 0.0
  %465 = vmatpush1.msra.mxu0 0.0
  %466 = vmatprep.subr.mxu0 0.0
  %467 = vmatpush1.msra.mxu0 0.0
  %468 = vmatprep.subr.mxu0 0.0
  %469 = vmatpush1.msra.mxu0 0.0
  %470 = vmatprep.subr.mxu0 0.0
  %471 = vmatpush1.msra.mxu0 0.0
  %472 = vmatprep.subr.mxu0 0.0
  %473 = vmatpush1.msra.mxu0 0.0
  %474 = vmatprep.subr.mxu0 0.0
  %475 = vmatpush1.msra.mxu0 0.0
  %476 = vmatprep.subr.mxu0 0.0
  %477 = vmatpush1.msra.mxu0 0.0
  %478 = vmatprep.subr.mxu0 0.0
  %479 = vmatpush1.msra.mxu0 0.0
  %480 = vmatprep.subr.mxu0 0.0
  %481 = vmatpush1.msra.mxu0 0.0
  %482 = vmatprep.subr.mxu0 0.0
  %483 = vmatpush1.msra.mxu0 0.0
  %484 = vmatprep.subr.mxu0 0.0
  %485 = vmatpush1.msra.mxu0 0.0
  %486 = vmatprep.subr.mxu0 0.0
  %487 = vmatpush1.msra.mxu0 0.0
  %488 = vmatprep.subr.mxu0 0.0
  %489 = vmatpush1.msra.mxu0 0.0
  %490 = vmatprep.subr.mxu0 0.0
  %491 = vmatpush1.msra.mxu0 0.0
  %492 = vmatprep.subr.mxu0 0.0
  %493 = vmatpush1.msra.mxu0 0.0
  %494 = vmatprep.subr.mxu0 0.0
  %495 = vmatpush1.msra.mxu0 0.0
  %496 = vmatprep.subr.mxu0 0.0
  %497 = vmatpush1.msra.mxu0 0.0
  %498 = vmatprep.mubr.f32.mxu0 0.0
  %499 = vmatmul.mubr.f32.gmra.mrb[0].mxu0 %v432
  %v500 = vpop.f32.mrb[0].mxu0
  %v501 = vadd.f32 0.0, %v500
  %v502 = vpop.f32.mrb[0].mxu0
  %503 = vdwg.mxu0
  %v505 = vsel %vm25, %v423, 0
  %507 = vmatprep.subr.mxu0 0.0
  %508 = vmatpush1.msra.mxu0 %v19
  %509 = vmatprep.subr.mxu0 0.0
  %510 = vmatpush1.msra.mxu0 %v20
  %511 = vmatprep.subr.mxu0 0.0
  %512 = vmatpush1.msra.mxu0 0.0
  %513 = vmatprep.subr.mxu0 0.0
  %514 = vmatpush1.msra.mxu0 0.0
  %515 = vmatprep.subr.mxu0 0.0
  %516 = vmatpush1.msra.mxu0 0.0
  %517 = vmatprep.subr.mxu0 0.0
  %518 = vmatpush1.msra.mxu0 0.0
  %519 = vmatprep.subr.mxu0 0.0
  %520 = vmatpush1.msra.mxu0 0.0
  %521 = vmatprep.subr.mxu0 0.0
  %522 = vmatpush1.msra.mxu0 0.0
  %523 = vmatprep.subr.mxu0 0.0
  %524 = vmatpush1.msra.mxu0 0.0
  %525 = vmatprep.subr.mxu0 0.0
  %526 = vmatpush1.msra.mxu0 0.0
  %527 = vmatprep.subr.mxu0 0.0
  %528 = vmatpush1.msra.mxu0 0.0
  %529 = vmatprep.subr.mxu0 0.0
  %530 = vmatpush1.msra.mxu0 0.0
  %531 = vmatprep.subr.mxu0 0.0
  %532 = vmatpush1.msra.mxu0 0.0
  %533 = vmatprep.subr.mxu0 0.0
  %534 = vmatpush1.msra.mxu0 0.0
  %535 = vmatprep.subr.mxu0 0.0
  %536 = vmatpush1.msra.mxu0 0.0
  %537 = vmatprep.subr.mxu0 0.0
  %538 = vmatpush1.msra.mxu0 0.0
  %539 = vmatprep.subr.mxu0 0.0
  %540 = vmatpush1.msra.mxu0 0.0
  %541 = vmatprep.subr.mxu0 0.0
  %542 = vmatpush1.msra.mxu0 0.0
  %543 = vmatprep.subr.mxu0 0.0
  %544 = vmatpush1.msra.mxu0 0.0
  %545 = vmatprep.subr.mxu0 0.0
  %546 = vmatpush1.msra.mxu0 0.0
  %547 = vmatprep.subr.mxu0 0.0
  %548 = vmatpush1.msra.mxu0 0.0
  %549 = vmatprep.subr.mxu0 0.0
  %550 = vmatpush1.msra.mxu0 0.0
  %551 = vmatprep.subr.mxu0 0.0
  %552 = vmatpush1.msra.mxu0 0.0
  %553 = vmatprep.subr.mxu0 0.0
  %554 = vmatpush1.msra.mxu0 0.0
  %555 = vmatprep.subr.mxu0 0.0
  %556 = vmatpush1.msra.mxu0 0.0
  %557 = vmatprep.subr.mxu0 0.0
  %558 = vmatpush1.msra.mxu0 0.0
  %559 = vmatprep.subr.mxu0 0.0
  %560 = vmatpush1.msra.mxu0 0.0
  %561 = vmatprep.subr.mxu0 0.0
  %562 = vmatpush1.msra.mxu0 0.0
  %563 = vmatprep.subr.mxu0 0.0
  %564 = vmatpush1.msra.mxu0 0.0
  %565 = vmatprep.subr.mxu0 0.0
  %566 = vmatpush1.msra.mxu0 0.0
  %567 = vmatprep.subr.mxu0 0.0
  %568 = vmatpush1.msra.mxu0 0.0
  %569 = vmatprep.subr.mxu0 0.0
  %570 = vmatpush1.msra.mxu0 0.0
  %571 = vmatprep.mubr.f32.mxu0 0.0
  %572 = vmatmul.mubr.f32.gmra.mrb[0].mxu0 %v505
  %v573 = vpop.f32.mrb[0].mxu0
  %v574 = vadd.f32 0.0, %v573
  %v575 = vpop.f32.mrb[0].mxu0
  %576 = vdwg.mxu0
  %v578 = vsel %vm25, %v428, 0
  %580 = vmatprep.subr.mxu0 0.0
  %581 = vmatpush1.msra.mxu0 %v21
  %582 = vmatprep.subr.mxu0 0.0
  %583 = vmatpush1.msra.mxu0 %v22
  %584 = vmatprep.subr.mxu0 0.0
  %585 = vmatpush1.msra.mxu0 0.0
  %586 = vmatprep.subr.mxu0 0.0
  %587 = vmatpush1.msra.mxu0 0.0
  %588 = vmatprep.subr.mxu0 0.0
  %589 = vmatpush1.msra.mxu0 0.0
  %590 = vmatprep.subr.mxu0 0.0
  %591 = vmatpush1.msra.mxu0 0.0
  %592 = vmatprep.subr.mxu0 0.0
  %593 = vmatpush1.msra.mxu0 0.0
  %594 = vmatprep.subr.mxu0 0.0
  %595 = vmatpush1.msra.mxu0 0.0
  %596 = vmatprep.subr.mxu0 0.0
  %597 = vmatpush1.msra.mxu0 0.0
  %598 = vmatprep.subr.mxu0 0.0
  %599 = vmatpush1.msra.mxu0 0.0
  %600 = vmatprep.subr.mxu0 0.0
  %601 = vmatpush1.msra.mxu0 0.0
  %602 = vmatprep.subr.mxu0 0.0
  %603 = vmatpush1.msra.mxu0 0.0
  %604 = vmatprep.subr.mxu0 0.0
  %605 = vmatpush1.msra.mxu0 0.0
  %606 = vmatprep.subr.mxu0 0.0
  %607 = vmatpush1.msra.mxu0 0.0
  %608 = vmatprep.subr.mxu0 0.0
  %609 = vmatpush1.msra.mxu0 0.0
  %610 = vmatprep.subr.mxu0 0.0
  %611 = vmatpush1.msra.mxu0 0.0
  %612 = vmatprep.subr.mxu0 0.0
  %613 = vmatpush1.msra.mxu0 0.0
  %614 = vmatprep.subr.mxu0 0.0
  %615 = vmatpush1.msra.mxu0 0.0
  %616 = vmatprep.subr.mxu0 0.0
  %617 = vmatpush1.msra.mxu0 0.0
  %618 = vmatprep.subr.mxu0 0.0
  %619 = vmatpush1.msra.mxu0 0.0
  %620 = vmatprep.subr.mxu0 0.0
  %621 = vmatpush1.msra.mxu0 0.0
  %622 = vmatprep.subr.mxu0 0.0
  %623 = vmatpush1.msra.mxu0 0.0
  %624 = vmatprep.subr.mxu0 0.0
  %625 = vmatpush1.msra.mxu0 0.0
  %626 = vmatprep.subr.mxu0 0.0
  %627 = vmatpush1.msra.mxu0 0.0
  %628 = vmatprep.subr.mxu0 0.0
  %629 = vmatpush1.msra.mxu0 0.0
  %630 = vmatprep.subr.mxu0 0.0
  %631 = vmatpush1.msra.mxu0 0.0
  %632 = vmatprep.subr.mxu0 0.0
  %633 = vmatpush1.msra.mxu0 0.0
  %634 = vmatprep.subr.mxu0 0.0
  %635 = vmatpush1.msra.mxu0 0.0
  %636 = vmatprep.subr.mxu0 0.0
  %637 = vmatpush1.msra.mxu0 0.0
  %638 = vmatprep.subr.mxu0 0.0
  %639 = vmatpush1.msra.mxu0 0.0
  %640 = vmatprep.subr.mxu0 0.0
  %641 = vmatpush1.msra.mxu0 0.0
  %642 = vmatprep.subr.mxu0 0.0
  %643 = vmatpush1.msra.mxu0 0.0
  %644 = vmatprep.mubr.f32.mxu0 0.0
  %645 = vmatmul.mubr.f32.gmra.mrb[0].mxu0 %v578
  %v646 = vpop.f32.mrb[0].mxu0
  %v647 = vadd.f32 0.0, %v646
  %v648 = vpop.f32.mrb[0].mxu0
  %649 = vdwg.mxu0
  %650 = vst.msk [vmem:[%s3 + $0x8] sm:$0xff] %vm334, %v501
  %652 = vrot.lane.b32.xlu0 %v574, 8
  %v653 = vpop.permute.xlu0 %652
  %655 = vst.msk [vmem:[%s3 + $0x8] sm:$0xff] %vm340, %v653
  %657 = vrot.lane.b32.xlu0 %v647, 16
  %v658 = vpop.permute.xlu0 %657
  %660 = vst.msk [vmem:[%s3 + $0x8] sm:$0xff] %vm346, %v658
  %s661 = scalar_lea.vmem %s2, 32
  %v662 = vld [vmem:[%s661] sm:$0xff]
  %v663 = vld [vmem:[%s661 + $0x8] sm:$0xff]
  %664 = vmatprep.subr.mxu0 0.0
  %665 = vmatpush1.msra.mxu0 %v662
  %666 = vmatprep.subr.mxu0 0.0
  %667 = vmatpush1.msra.mxu0 %v663
  %668 = vmatprep.subr.mxu0 0.0
  %669 = vmatpush1.msra.mxu0 0.0
  %670 = vmatprep.subr.mxu0 0.0
  %671 = vmatpush1.msra.mxu0 0.0
  %672 = vmatprep.subr.mxu0 0.0
  %673 = vmatpush1.msra.mxu0 0.0
  %674 = vmatprep.subr.mxu0 0.0
  %675 = vmatpush1.msra.mxu0 0.0
  %676 = vmatprep.subr.mxu0 0.0
  %677 = vmatpush1.msra.mxu0 0.0
  %678 = vmatprep.subr.mxu0 0.0
  %679 = vmatpush1.msra.mxu0 0.0
  %680 = vmatprep.subr.mxu0 0.0
  %681 = vmatpush1.msra.mxu0 0.0
  %682 = vmatprep.subr.mxu0 0.0
  %683 = vmatpush1.msra.mxu0 0.0
  %684 = vmatprep.subr.mxu0 0.0
  %685 = vmatpush1.msra.mxu0 0.0
  %686 = vmatprep.subr.mxu0 0.0
  %687 = vmatpush1.msra.mxu0 0.0
  %688 = vmatprep.subr.mxu0 0.0
  %689 = vmatpush1.msra.mxu0 0.0
  %690 = vmatprep.subr.mxu0 0.0
  %691 = vmatpush1.msra.mxu0 0.0
  %692 = vmatprep.subr.mxu0 0.0
  %693 = vmatpush1.msra.mxu0 0.0
  %694 = vmatprep.subr.mxu0 0.0
  %695 = vmatpush1.msra.mxu0 0.0
  %696 = vmatprep.subr.mxu0 0.0
  %697 = vmatpush1.msra.mxu0 0.0
  %698 = vmatprep.subr.mxu0 0.0
  %699 = vmatpush1.msra.mxu0 0.0
  %700 = vmatprep.subr.mxu0 0.0
  %701 = vmatpush1.msra.mxu0 0.0
  %702 = vmatprep.subr.mxu0 0.0
  %703 = vmatpush1.msra.mxu0 0.0
  %704 = vmatprep.subr.mxu0 0.0
  %705 = vmatpush1.msra.mxu0 0.0
  %706 = vmatprep.subr.mxu0 0.0
  %707 = vmatpush1.msra.mxu0 0.0
  %708 = vmatprep.subr.mxu0 0.0
  %709 = vmatpush1.msra.mxu0 0.0
  %710 = vmatprep.subr.mxu0 0.0
  %711 = vmatpush1.msra.mxu0 0.0
  %712 = vmatprep.subr.mxu0 0.0
  %713 = vmatpush1.msra.mxu0 0.0
  %714 = vmatprep.subr.mxu0 0.0
  %715 = vmatpush1.msra.mxu0 0.0
  %716 = vmatprep.subr.mxu0 0.0
  %717 = vmatpush1.msra.mxu0 0.0
  %718 = vmatprep.subr.mxu0 0.0
  %719 = vmatpush1.msra.mxu0 0.0
  %720 = vmatprep.subr.mxu0 0.0
  %721 = vmatpush1.msra.mxu0 0.0
  %722 = vmatprep.subr.mxu0 0.0
  %723 = vmatpush1.msra.mxu0 0.0
  %724 = vmatprep.subr.mxu0 0.0
  %725 = vmatpush1.msra.mxu0 0.0
  %726 = vmatprep.subr.mxu0 0.0
  %727 = vmatpush1.msra.mxu0 0.0
  %728 = vmatprep.mubr.f32.mxu0 0.0
  %729 = vmatmul.mubr.f32.gmra.mrb[0].mxu0 %v27
  %v730 = vpop.f32.mrb[0].mxu0
  %v731 = vadd.f32 0.0, %v730
  %v732 = vpop.f32.mrb[0].mxu0
  %733 = vmatprep.mubr.f32.mxu0 0.0
  %734 = vmatmul.mubr.f32.gmra.mrb[0].mxu0 %v30
  %v735 = vpop.f32.mrb[0].mxu0
  %v736 = vadd.f32 0.0, %v735
  %v737 = vpop.f32.mrb[0].mxu0
  %738 = vmatprep.mubr.f32.mxu0 0.0
  %739 = vmatmul.mubr.f32.gmra.mrb[0].mxu0 %v33
  %v740 = vpop.f32.mrb[0].mxu0
  %v741 = vadd.f32 0.0, %v740
  %v742 = vpop.f32.mrb[0].mxu0
  %743 = vdwg.mxu0
  %v745 = vsel %vm25, %v731, 0
  %747 = vmatprep.subr.mxu0 0.0
  %748 = vmatpush1.msra.mxu0 %v17
  %749 = vmatprep.subr.mxu0 0.0
  %750 = vmatpush1.msra.mxu0 %v18
  %751 = vmatprep.subr.mxu0 0.0
  %752 = vmatpush1.msra.mxu0 0.0
  %753 = vmatprep.subr.mxu0 0.0
  %754 = vmatpush1.msra.mxu0 0.0
  %755 = vmatprep.subr.mxu0 0.0
  %756 = vmatpush1.msra.mxu0 0.0
  %757 = vmatprep.subr.mxu0 0.0
  %758 = vmatpush1.msra.mxu0 0.0
  %759 = vmatprep.subr.mxu0 0.0
  %760 = vmatpush1.msra.mxu0 0.0
  %761 = vmatprep.subr.mxu0 0.0
  %762 = vmatpush1.msra.mxu0 0.0
  %763 = vmatprep.subr.mxu0 0.0
  %764 = vmatpush1.msra.mxu0 0.0
  %765 = vmatprep.subr.mxu0 0.0
  %766 = vmatpush1.msra.mxu0 0.0
  %767 = vmatprep.subr.mxu0 0.0
  %768 = vmatpush1.msra.mxu0 0.0
  %769 = vmatprep.subr.mxu0 0.0
  %770 = vmatpush1.msra.mxu0 0.0
  %771 = vmatprep.subr.mxu0 0.0
  %772 = vmatpush1.msra.mxu0 0.0
  %773 = vmatprep.subr.mxu0 0.0
  %774 = vmatpush1.msra.mxu0 0.0
  %775 = vmatprep.subr.mxu0 0.0
  %776 = vmatpush1.msra.mxu0 0.0
  %777 = vmatprep.subr.mxu0 0.0
  %778 = vmatpush1.msra.mxu0 0.0
  %779 = vmatprep.subr.mxu0 0.0
  %780 = vmatpush1.msra.mxu0 0.0
  %781 = vmatprep.subr.mxu0 0.0
  %782 = vmatpush1.msra.mxu0 0.0
  %783 = vmatprep.subr.mxu0 0.0
  %784 = vmatpush1.msra.mxu0 0.0
  %785 = vmatprep.subr.mxu0 0.0
  %786 = vmatpush1.msra.mxu0 0.0
  %787 = vmatprep.subr.mxu0 0.0
  %788 = vmatpush1.msra.mxu0 0.0
  %789 = vmatprep.subr.mxu0 0.0
  %790 = vmatpush1.msra.mxu0 0.0
  %791 = vmatprep.subr.mxu0 0.0
  %792 = vmatpush1.msra.mxu0 0.0
  %793 = vmatprep.subr.mxu0 0.0
  %794 = vmatpush1.msra.mxu0 0.0
  %795 = vmatprep.subr.mxu0 0.0
  %796 = vmatpush1.msra.mxu0 0.0
  %797 = vmatprep.subr.mxu0 0.0
  %798 = vmatpush1.msra.mxu0 0.0
  %799 = vmatprep.subr.mxu0 0.0
  %800 = vmatpush1.msra.mxu0 0.0
  %801 = vmatprep.subr.mxu0 0.0
  %802 = vmatpush1.msra.mxu0 0.0
  %803 = vmatprep.subr.mxu0 0.0
  %804 = vmatpush1.msra.mxu0 0.0
  %805 = vmatprep.subr.mxu0 0.0
  %806 = vmatpush1.msra.mxu0 0.0
  %807 = vmatprep.subr.mxu0 0.0
  %808 = vmatpush1.msra.mxu0 0.0
  %809 = vmatprep.subr.mxu0 0.0
  %810 = vmatpush1.msra.mxu0 0.0
  %811 = vmatprep.mubr.f32.mxu0 0.0
  %812 = vmatmul.mubr.f32.gmra.mrb[0].mxu0 %v745
  %v813 = vpop.f32.mrb[0].mxu0
  %v814 = vadd.f32 0.0, %v813
  %v815 = vpop.f32.mrb[0].mxu0
  %816 = vdwg.mxu0
  %v818 = vsel %vm25, %v736, 0
  %820 = vmatprep.subr.mxu0 0.0
  %821 = vmatpush1.msra.mxu0 %v19
  %822 = vmatprep.subr.mxu0 0.0
  %823 = vmatpush1.msra.mxu0 %v20
  %824 = vmatprep.subr.mxu0 0.0
  %825 = vmatpush1.msra.mxu0 0.0
  %826 = vmatprep.subr.mxu0 0.0
  %827 = vmatpush1.msra.mxu0 0.0
  %828 = vmatprep.subr.mxu0 0.0
  %829 = vmatpush1.msra.mxu0 0.0
  %830 = vmatprep.subr.mxu0 0.0
  %831 = vmatpush1.msra.mxu0 0.0
  %832 = vmatprep.subr.mxu0 0.0
  %833 = vmatpush1.msra.mxu0 0.0
  %834 = vmatprep.subr.mxu0 0.0
  %835 = vmatpush1.msra.mxu0 0.0
  %836 = vmatprep.subr.mxu0 0.0
  %837 = vmatpush1.msra.mxu0 0.0
  %838 = vmatprep.subr.mxu0 0.0
  %839 = vmatpush1.msra.mxu0 0.0
  %840 = vmatprep.subr.mxu0 0.0
  %841 = vmatpush1.msra.mxu0 0.0
  %842 = vmatprep.subr.mxu0 0.0
  %843 = vmatpush1.msra.mxu0 0.0
  %844 = vmatprep.subr.mxu0 0.0
  %845 = vmatpush1.msra.mxu0 0.0
  %846 = vmatprep.subr.mxu0 0.0
  %847 = vmatpush1.msra.mxu0 0.0
  %848 = vmatprep.subr.mxu0 0.0
  %849 = vmatpush1.msra.mxu0 0.0
  %850 = vmatprep.subr.mxu0 0.0
  %851 = vmatpush1.msra.mxu0 0.0
  %852 = vmatprep.subr.mxu0 0.0
  %853 = vmatpush1.msra.mxu0 0.0
  %854 = vmatprep.subr.mxu0 0.0
  %855 = vmatpush1.msra.mxu0 0.0
  %856 = vmatprep.subr.mxu0 0.0
  %857 = vmatpush1.msra.mxu0 0.0
  %858 = vmatprep.subr.mxu0 0.0
  %859 = vmatpush1.msra.mxu0 0.0
  %860 = vmatprep.subr.mxu0 0.0
  %861 = vmatpush1.msra.mxu0 0.0
  %862 = vmatprep.subr.mxu0 0.0
  %863 = vmatpush1.msra.mxu0 0.0
  %864 = vmatprep.subr.mxu0 0.0
  %865 = vmatpush1.msra.mxu0 0.0
  %866 = vmatprep.subr.mxu0 0.0
  %867 = vmatpush1.msra.mxu0 0.0
  %868 = vmatprep.subr.mxu0 0.0
  %869 = vmatpush1.msra.mxu0 0.0
  %870 = vmatprep.subr.mxu0 0.0
  %871 = vmatpush1.msra.mxu0 0.0
  %872 = vmatprep.subr.mxu0 0.0
  %873 = vmatpush1.msra.mxu0 0.0
  %874 = vmatprep.subr.mxu0 0.0
  %875 = vmatpush1.msra.mxu0 0.0
  %876 = vmatprep.subr.mxu0 0.0
  %877 = vmatpush1.msra.mxu0 0.0
  %878 = vmatprep.subr.mxu0 0.0
  %879 = vmatpush1.msra.mxu0 0.0
  %880 = vmatprep.subr.mxu0 0.0
  %881 = vmatpush1.msra.mxu0 0.0
  %882 = vmatprep.subr.mxu0 0.0
  %883 = vmatpush1.msra.mxu0 0.0
  %884 = vmatprep.mubr.f32.mxu0 0.0
  %885 = vmatmul.mubr.f32.gmra.mrb[0].mxu0 %v818
  %v886 = vpop.f32.mrb[0].mxu0
  %v887 = vadd.f32 0.0, %v886
  %v888 = vpop.f32.mrb[0].mxu0
  %889 = vdwg.mxu0
  %v891 = vsel %vm25, %v741, 0
  %893 = vmatprep.subr.mxu0 0.0
  %894 = vmatpush1.msra.mxu0 %v21
  %895 = vmatprep.subr.mxu0 0.0
  %896 = vmatpush1.msra.mxu0 %v22
  %897 = vmatprep.subr.mxu0 0.0
  %898 = vmatpush1.msra.mxu0 0.0
  %899 = vmatprep.subr.mxu0 0.0
  %900 = vmatpush1.msra.mxu0 0.0
  %901 = vmatprep.subr.mxu0 0.0
  %902 = vmatpush1.msra.mxu0 0.0
  %903 = vmatprep.subr.mxu0 0.0
  %904 = vmatpush1.msra.mxu0 0.0
  %905 = vmatprep.subr.mxu0 0.0
  %906 = vmatpush1.msra.mxu0 0.0
  %907 = vmatprep.subr.mxu0 0.0
  %908 = vmatpush1.msra.mxu0 0.0
  %909 = vmatprep.subr.mxu0 0.0
  %910 = vmatpush1.msra.mxu0 0.0
  %911 = vmatprep.subr.mxu0 0.0
  %912 = vmatpush1.msra.mxu0 0.0
  %913 = vmatprep.subr.mxu0 0.0
  %914 = vmatpush1.msra.mxu0 0.0
  %915 = vmatprep.subr.mxu0 0.0
  %916 = vmatpush1.msra.mxu0 0.0
  %917 = vmatprep.subr.mxu0 0.0
  %918 = vmatpush1.msra.mxu0 0.0
  %919 = vmatprep.subr.mxu0 0.0
  %920 = vmatpush1.msra.mxu0 0.0
  %921 = vmatprep.subr.mxu0 0.0
  %922 = vmatpush1.msra.mxu0 0.0
  %923 = vmatprep.subr.mxu0 0.0
  %924 = vmatpush1.msra.mxu0 0.0
  %925 = vmatprep.subr.mxu0 0.0
  %926 = vmatpush1.msra.mxu0 0.0
  %927 = vmatprep.subr.mxu0 0.0
  %928 = vmatpush1.msra.mxu0 0.0
  %929 = vmatprep.subr.mxu0 0.0
  %930 = vmatpush1.msra.mxu0 0.0
  %931 = vmatprep.subr.mxu0 0.0
  %932 = vmatpush1.msra.mxu0 0.0
  %933 = vmatprep.subr.mxu0 0.0
  %934 = vmatpush1.msra.mxu0 0.0
  %935 = vmatprep.subr.mxu0 0.0
  %936 = vmatpush1.msra.mxu0 0.0
  %937 = vmatprep.subr.mxu0 0.0
  %938 = vmatpush1.msra.mxu0 0.0
  %939 = vmatprep.subr.mxu0 0.0
  %940 = vmatpush1.msra.mxu0 0.0
  %941 = vmatprep.subr.mxu0 0.0
  %942 = vmatpush1.msra.mxu0 0.0
  %943 = vmatprep.subr.mxu0 0.0
  %944 = vmatpush1.msra.mxu0 0.0
  %945 = vmatprep.subr.mxu0 0.0
  %946 = vmatpush1.msra.mxu0 0.0
  %947 = vmatprep.subr.mxu0 0.0
  %948 = vmatpush1.msra.mxu0 0.0
  %949 = vmatprep.subr.mxu0 0.0
  %950 = vmatpush1.msra.mxu0 0.0
  %951 = vmatprep.subr.mxu0 0.0
  %952 = vmatpush1.msra.mxu0 0.0
  %953 = vmatprep.subr.mxu0 0.0
  %954 = vmatpush1.msra.mxu0 0.0
  %955 = vmatprep.subr.mxu0 0.0
  %956 = vmatpush1.msra.mxu0 0.0
  %957 = vmatprep.mubr.f32.mxu0 0.0
  %958 = vmatmul.mubr.f32.gmra.mrb[0].mxu0 %v891
  %v959 = vpop.f32.mrb[0].mxu0
  %v960 = vadd.f32 0.0, %v959
  %v961 = vpop.f32.mrb[0].mxu0
  %962 = vdwg.mxu0
  %963 = vst.msk [vmem:[%s3 + $0x10] sm:$0xff] %vm334, %v814
  %965 = vrot.lane.b32.xlu0 %v887, 8
  %v966 = vpop.permute.xlu0 %965
  %968 = vst.msk [vmem:[%s3 + $0x10] sm:$0xff] %vm340, %v966
  %970 = vrot.lane.b32.xlu0 %v960, 16
  %v971 = vpop.permute.xlu0 %970
  %973 = vst.msk [vmem:[%s3 + $0x10] sm:$0xff] %vm346, %v971
  %s974 = scalar_lea.vmem %s2, 48
  %v975 = vld [vmem:[%s974] sm:$0xff]
  %v976 = vld [vmem:[%s974 + $0x8] sm:$0xff]
  %977 = vmatprep.subr.mxu0 0.0
  %978 = vmatpush1.msra.mxu0 %v975
  %979 = vmatprep.subr.mxu0 0.0
  %980 = vmatpush1.msra.mxu0 %v976
  %981 = vmatprep.subr.mxu0 0.0
  %982 = vmatpush1.msra.mxu0 0.0
  %983 = vmatprep.subr.mxu0 0.0
  %984 = vmatpush1.msra.mxu0 0.0
  %985 = vmatprep.subr.mxu0 0.0
  %986 = vmatpush1.msra.mxu0 0.0
  %987 = vmatprep.subr.mxu0 0.0
  %988 = vmatpush1.msra.mxu0 0.0
  %989 = vmatprep.subr.mxu0 0.0
  %990 = vmatpush1.msra.mxu0 0.0
  %991 = vmatprep.subr.mxu0 0.0
  %992 = vmatpush1.msra.mxu0 0.0
  %993 = vmatprep.subr.mxu0 0.0
  %994 = vmatpush1.msra.mxu0 0.0
  %995 = vmatprep.subr.mxu0 0.0
  %996 = vmatpush1.msra.mxu0 0.0
  %997 = vmatprep.subr.mxu0 0.0
  %998 = vmatpush1.msra.mxu0 0.0
  %999 = vmatprep.subr.mxu0 0.0
  %1000 = vmatpush1.msra.mxu0 0.0
  %1001 = vmatprep.subr.mxu0 0.0
  %1002 = vmatpush1.msra.mxu0 0.0
  %1003 = vmatprep.subr.mxu0 0.0
  %1004 = vmatpush1.msra.mxu0 0.0
  %1005 = vmatprep.subr.mxu0 0.0
  %1006 = vmatpush1.msra.mxu0 0.0
  %1007 = vmatprep.subr.mxu0 0.0
  %1008 = vmatpush1.msra.mxu0 0.0
  %1009 = vmatprep.subr.mxu0 0.0
  %1010 = vmatpush1.msra.mxu0 0.0
  %1011 = vmatprep.subr.mxu0 0.0
  %1012 = vmatpush1.msra.mxu0 0.0
  %1013 = vmatprep.subr.mxu0 0.0
  %1014 = vmatpush1.msra.mxu0 0.0
  %1015 = vmatprep.subr.mxu0 0.0
  %1016 = vmatpush1.msra.mxu0 0.0
  %1017 = vmatprep.subr.mxu0 0.0
  %1018 = vmatpush1.msra.mxu0 0.0
  %1019 = vmatprep.subr.mxu0 0.0
  %1020 = vmatpush1.msra.mxu0 0.0
  %1021 = vmatprep.subr.mxu0 0.0
  %1022 = vmatpush1.msra.mxu0 0.0
  %1023 = vmatprep.subr.mxu0 0.0
  %1024 = vmatpush1.msra.mxu0 0.0
  %1025 = vmatprep.subr.mxu0 0.0
  %1026 = vmatpush1.msra.mxu0 0.0
  %1027 = vmatprep.subr.mxu0 0.0
  %1028 = vmatpush1.msra.mxu0 0.0
  %1029 = vmatprep.subr.mxu0 0.0
  %1030 = vmatpush1.msra.mxu0 0.0
  %1031 = vmatprep.subr.mxu0 0.0
  %1032 = vmatpush1.msra.mxu0 0.0
  %1033 = vmatprep.subr.mxu0 0.0
  %1034 = vmatpush1.msra.mxu0 0.0
  %1035 = vmatprep.subr.mxu0 0.0
  %1036 = vmatpush1.msra.mxu0 0.0
  %1037 = vmatprep.subr.mxu0 0.0
  %1038 = vmatpush1.msra.mxu0 0.0
  %1039 = vmatprep.subr.mxu0 0.0
  %1040 = vmatpush1.msra.mxu0 0.0
  %1041 = vmatprep.mubr.f32.mxu0 0.0
  %1042 = vmatmul.mubr.f32.gmra.mrb[0].mxu0 %v27
  %v1043 = vpop.f32.mrb[0].mxu0
  %v1044 = vadd.f32 0.0, %v1043
  %v1045 = vpop.f32.mrb[0].mxu0
  %1046 = vmatprep.mubr.f32.mxu0 0.0
  %1047 = vmatmul.mubr.f32.gmra.mrb[0].mxu0 %v30
  %v1048 = vpop.f32.mrb[0].mxu0
  %v1049 = vadd.f32 0.0, %v1048
  %v1050 = vpop.f32.mrb[0].mxu0
  %1051 = vmatprep.mubr.f32.mxu0 0.0
  %1052 = vmatmul.mubr.f32.gmra.mrb[0].mxu0 %v33
  %v1053 = vpop.f32.mrb[0].mxu0
  %v1054 = vadd.f32 0.0, %v1053
  %v1055 = vpop.f32.mrb[0].mxu0
  %1056 = vdwg.mxu0
  %v1058 = vsel %vm25, %v1044, 0
  %1060 = vmatprep.subr.mxu0 0.0
  %1061 = vmatpush1.msra.mxu0 %v17
  %1062 = vmatprep.subr.mxu0 0.0
  %1063 = vmatpush1.msra.mxu0 %v18
  %1064 = vmatprep.subr.mxu0 0.0
  %1065 = vmatpush1.msra.mxu0 0.0
  %1066 = vmatprep.subr.mxu0 0.0
  %1067 = vmatpush1.msra.mxu0 0.0
  %1068 = vmatprep.subr.mxu0 0.0
  %1069 = vmatpush1.msra.mxu0 0.0
  %1070 = vmatprep.subr.mxu0 0.0
  %1071 = vmatpush1.msra.mxu0 0.0
  %1072 = vmatprep.subr.mxu0 0.0
  %1073 = vmatpush1.msra.mxu0 0.0
  %1074 = vmatprep.subr.mxu0 0.0
  %1075 = vmatpush1.msra.mxu0 0.0
  %1076 = vmatprep.subr.mxu0 0.0
  %1077 = vmatpush1.msra.mxu0 0.0
  %1078 = vmatprep.subr.mxu0 0.0
  %1079 = vmatpush1.msra.mxu0 0.0
  %1080 = vmatprep.subr.mxu0 0.0
  %1081 = vmatpush1.msra.mxu0 0.0
  %1082 = vmatprep.subr.mxu0 0.0
  %1083 = vmatpush1.msra.mxu0 0.0
  %1084 = vmatprep.subr.mxu0 0.0
  %1085 = vmatpush1.msra.mxu0 0.0
  %1086 = vmatprep.subr.mxu0 0.0
  %1087 = vmatpush1.msra.mxu0 0.0
  %1088 = vmatprep.subr.mxu0 0.0
  %1089 = vmatpush1.msra.mxu0 0.0
  %1090 = vmatprep.subr.mxu0 0.0
  %1091 = vmatpush1.msra.mxu0 0.0
  %1092 = vmatprep.subr.mxu0 0.0
  %1093 = vmatpush1.msra.mxu0 0.0
  %1094 = vmatprep.subr.mxu0 0.0
  %1095 = vmatpush1.msra.mxu0 0.0
  %1096 = vmatprep.subr.mxu0 0.0
  %1097 = vmatpush1.msra.mxu0 0.0
  %1098 = vmatprep.subr.mxu0 0.0
  %1099 = vmatpush1.msra.mxu0 0.0
  %1100 = vmatprep.subr.mxu0 0.0
  %1101 = vmatpush1.msra.mxu0 0.0
  %1102 = vmatprep.subr.mxu0 0.0
  %1103 = vmatpush1.msra.mxu0 0.0
  %1104 = vmatprep.subr.mxu0 0.0
  %1105 = vmatpush1.msra.mxu0 0.0
  %1106 = vmatprep.subr.mxu0 0.0
  %1107 = vmatpush1.msra.mxu0 0.0
  %1108 = vmatprep.subr.mxu0 0.0
  %1109 = vmatpush1.msra.mxu0 0.0
  %1110 = vmatprep.subr.mxu0 0.0
  %1111 = vmatpush1.msra.mxu0 0.0
  %1112 = vmatprep.subr.mxu0 0.0
  %1113 = vmatpush1.msra.mxu0 0.0
  %1114 = vmatprep.subr.mxu0 0.0
  %1115 = vmatpush1.msra.mxu0 0.0
  %1116 = vmatprep.subr.mxu0 0.0
  %1117 = vmatpush1.msra.mxu0 0.0
  %1118 = vmatprep.subr.mxu0 0.0
  %1119 = vmatpush1.msra.mxu0 0.0
  %1120 = vmatprep.subr.mxu0 0.0
  %1121 = vmatpush1.msra.mxu0 0.0
  %1122 = vmatprep.subr.mxu0 0.0
  %1123 = vmatpush1.msra.mxu0 0.0
  %1124 = vmatprep.mubr.f32.mxu0 0.0
  %1125 = vmatmul.mubr.f32.gmra.mrb[0].mxu0 %v1058
  %v1126 = vpop.f32.mrb[0].mxu0
  %v1127 = vadd.f32 0.0, %v1126
  %v1128 = vpop.f32.mrb[0].mxu0
  %1129 = vdwg.mxu0
  %v1131 = vsel %vm25, %v1049, 0
  %1133 = vmatprep.subr.mxu0 0.0
  %1134 = vmatpush1.msra.mxu0 %v19
  %1135 = vmatprep.subr.mxu0 0.0
  %1136 = vmatpush1.msra.mxu0 %v20
  %1137 = vmatprep.subr.mxu0 0.0
  %1138 = vmatpush1.msra.mxu0 0.0
  %1139 = vmatprep.subr.mxu0 0.0
  %1140 = vmatpush1.msra.mxu0 0.0
  %1141 = vmatprep.subr.mxu0 0.0
  %1142 = vmatpush1.msra.mxu0 0.0
  %1143 = vmatprep.subr.mxu0 0.0
  %1144 = vmatpush1.msra.mxu0 0.0
  %1145 = vmatprep.subr.mxu0 0.0
  %1146 = vmatpush1.msra.mxu0 0.0
  %1147 = vmatprep.subr.mxu0 0.0
  %1148 = vmatpush1.msra.mxu0 0.0
  %1149 = vmatprep.subr.mxu0 0.0
  %1150 = vmatpush1.msra.mxu0 0.0
  %1151 = vmatprep.subr.mxu0 0.0
  %1152 = vmatpush1.msra.mxu0 0.0
  %1153 = vmatprep.subr.mxu0 0.0
  %1154 = vmatpush1.msra.mxu0 0.0
  %1155 = vmatprep.subr.mxu0 0.0
  %1156 = vmatpush1.msra.mxu0 0.0
  %1157 = vmatprep.subr.mxu0 0.0
  %1158 = vmatpush1.msra.mxu0 0.0
  %1159 = vmatprep.subr.mxu0 0.0
  %1160 = vmatpush1.msra.mxu0 0.0
  %1161 = vmatprep.subr.mxu0 0.0
  %1162 = vmatpush1.msra.mxu0 0.0
  %1163 = vmatprep.subr.mxu0 0.0
  %1164 = vmatpush1.msra.mxu0 0.0
  %1165 = vmatprep.subr.mxu0 0.0
  %1166 = vmatpush1.msra.mxu0 0.0
  %1167 = vmatprep.subr.mxu0 0.0
  %1168 = vmatpush1.msra.mxu0 0.0
  %1169 = vmatprep.subr.mxu0 0.0
  %1170 = vmatpush1.msra.mxu0 0.0
  %1171 = vmatprep.subr.mxu0 0.0
  %1172 = vmatpush1.msra.mxu0 0.0
  %1173 = vmatprep.subr.mxu0 0.0
  %1174 = vmatpush1.msra.mxu0 0.0
  %1175 = vmatprep.subr.mxu0 0.0
  %1176 = vmatpush1.msra.mxu0 0.0
  %1177 = vmatprep.subr.mxu0 0.0
  %1178 = vmatpush1.msra.mxu0 0.0
  %1179 = vmatprep.subr.mxu0 0.0
  %1180 = vmatpush1.msra.mxu0 0.0
  %1181 = vmatprep.subr.mxu0 0.0
  %1182 = vmatpush1.msra.mxu0 0.0
  %1183 = vmatprep.subr.mxu0 0.0
  %1184 = vmatpush1.msra.mxu0 0.0
  %1185 = vmatprep.subr.mxu0 0.0
  %1186 = vmatpush1.msra.mxu0 0.0
  %1187 = vmatprep.subr.mxu0 0.0
  %1188 = vmatpush1.msra.mxu0 0.0
  %1189 = vmatprep.subr.mxu0 0.0
  %1190 = vmatpush1.msra.mxu0 0.0
  %1191 = vmatprep.subr.mxu0 0.0
  %1192 = vmatpush1.msra.mxu0 0.0
  %1193 = vmatprep.subr.mxu0 0.0
  %1194 = vmatpush1.msra.mxu0 0.0
  %1195 = vmatprep.subr.mxu0 0.0
  %1196 = vmatpush1.msra.mxu0 0.0
  %1197 = vmatprep.mubr.f32.mxu0 0.0
  %1198 = vmatmul.mubr.f32.gmra.mrb[0].mxu0 %v1131
  %v1199 = vpop.f32.mrb[0].mxu0
  %v1200 = vadd.f32 0.0, %v1199
  %v1201 = vpop.f32.mrb[0].mxu0
  %1202 = vdwg.mxu0
  %v1204 = vsel %vm25, %v1054, 0
  %1206 = vmatprep.subr.mxu0 0.0
  %1207 = vmatpush1.msra.mxu0 %v21
  %1208 = vmatprep.subr.mxu0 0.0
  %1209 = vmatpush1.msra.mxu0 %v22
  %1210 = vmatprep.subr.mxu0 0.0
  %1211 = vmatpush1.msra.mxu0 0.0
  %1212 = vmatprep.subr.mxu0 0.0
  %1213 = vmatpush1.msra.mxu0 0.0
  %1214 = vmatprep.subr.mxu0 0.0
  %1215 = vmatpush1.msra.mxu0 0.0
  %1216 = vmatprep.subr.mxu0 0.0
  %1217 = vmatpush1.msra.mxu0 0.0
  %1218 = vmatprep.subr.mxu0 0.0
  %1219 = vmatpush1.msra.mxu0 0.0
  %1220 = vmatprep.subr.mxu0 0.0
  %1221 = vmatpush1.msra.mxu0 0.0
  %1222 = vmatprep.subr.mxu0 0.0
  %1223 = vmatpush1.msra.mxu0 0.0
  %1224 = vmatprep.subr.mxu0 0.0
  %1225 = vmatpush1.msra.mxu0 0.0
  %1226 = vmatprep.subr.mxu0 0.0
  %1227 = vmatpush1.msra.mxu0 0.0
  %1228 = vmatprep.subr.mxu0 0.0
  %1229 = vmatpush1.msra.mxu0 0.0
  %1230 = vmatprep.subr.mxu0 0.0
  %1231 = vmatpush1.msra.mxu0 0.0
  %1232 = vmatprep.subr.mxu0 0.0
  %1233 = vmatpush1.msra.mxu0 0.0
  %1234 = vmatprep.subr.mxu0 0.0
  %1235 = vmatpush1.msra.mxu0 0.0
  %1236 = vmatprep.subr.mxu0 0.0
  %1237 = vmatpush1.msra.mxu0 0.0
  %1238 = vmatprep.subr.mxu0 0.0
  %1239 = vmatpush1.msra.mxu0 0.0
  %1240 = vmatprep.subr.mxu0 0.0
  %1241 = vmatpush1.msra.mxu0 0.0
  %1242 = vmatprep.subr.mxu0 0.0
  %1243 = vmatpush1.msra.mxu0 0.0
  %1244 = vmatprep.subr.mxu0 0.0
  %1245 = vmatpush1.msra.mxu0 0.0
  %1246 = vmatprep.subr.mxu0 0.0
  %1247 = vmatpush1.msra.mxu0 0.0
  %1248 = vmatprep.subr.mxu0 0.0
  %1249 = vmatpush1.msra.mxu0 0.0
  %1250 = vmatprep.subr.mxu0 0.0
  %1251 = vmatpush1.msra.mxu0 0.0
  %1252 = vmatprep.subr.mxu0 0.0
  %1253 = vmatpush1.msra.mxu0 0.0
  %1254 = vmatprep.subr.mxu0 0.0
  %1255 = vmatpush1.msra.mxu0 0.0
  %1256 = vmatprep.subr.mxu0 0.0
  %1257 = vmatpush1.msra.mxu0 0.0
  %1258 = vmatprep.subr.mxu0 0.0
  %1259 = vmatpush1.msra.mxu0 0.0
  %1260 = vmatprep.subr.mxu0 0.0
  %1261 = vmatpush1.msra.mxu0 0.0
  %1262 = vmatprep.subr.mxu0 0.0
  %1263 = vmatpush1.msra.mxu0 0.0
  %1264 = vmatprep.subr.mxu0 0.0
  %1265 = vmatpush1.msra.mxu0 0.0
  %1266 = vmatprep.subr.mxu0 0.0
  %1267 = vmatpush1.msra.mxu0 0.0
  %1268 = vmatprep.subr.mxu0 0.0
  %1269 = vmatpush1.msra.mxu0 0.0
  %1270 = vmatprep.mubr.f32.mxu0 0.0
  %1271 = vmatmul.mubr.f32.gmra.mrb[0].mxu0 %v1204
  %v1272 = vpop.f32.mrb[0].mxu0
  %v1273 = vadd.f32 0.0, %v1272
  %v1274 = vpop.f32.mrb[0].mxu0
  %1275 = vdwg.mxu0
  %1276 = vst.msk [vmem:[%s3 + $0x18] sm:$0xff] %vm334, %v1127
  %1278 = vrot.lane.b32.xlu0 %v1200, 8
  %v1279 = vpop.permute.xlu0 %1278
  %1281 = vst.msk [vmem:[%s3 + $0x18] sm:$0xff] %vm340, %v1279
  %1283 = vrot.lane.b32.xlu0 %v1273, 16
  %v1284 = vpop.permute.xlu0 %1283
  %1286 = vst.msk [vmem:[%s3 + $0x18] sm:$0xff] %vm346, %v1284
  // Predicated region
  $region14: #{tpu_custom_call.1} parent=0 // pred_check
    _
  $region15: #{tpu_custom_call.1} parent=0 // pred_check_branch
    %1288 = sbr.rel (0) target = $region17
  $region16: #{tpu_custom_call.1} parent=0 // pred_region
    _
  $region17: #{tpu_custom_call.1} parent=0 // pred_fallthru
    _
  // Predicated region
  $region18: #{tpu_custom_call.1} parent=0 // pred_check
    _
  $region19: #{tpu_custom_call.1} parent=0 // pred_check_branch
    %1290 = sbr.rel (0) target = $region21
  $region20: #{tpu_custom_call.1} parent=0 // pred_region
    _
  $region21: #{tpu_custom_call.1} parent=0 // pred_fallthru
    _

// kernel: tpu_custom_call.1
$region0: #{tpu_custom_call.1}
  #allocation0 [shape = 'u32[]', space=smem, size = 0x4, offset = 0x4, fixed_abs, tag = 'smem constant byte address 0x4 - core index']
  #allocation1 [shape = 'u32[144,128]{1,0:T(1,128)}', space=vmem, size = 0x12000, scoped, tag = 'internal scratch']
  %s0 = inlined_call_operand.vmem [shape: f32[24,16], index: 0, kind: input, shape index: {}]
  %s1 = inlined_call_operand.vmem [shape: f32[3,16,8], index: 1, kind: input, shape index: {}]
  %s2 = inlined_call_operand.vmem [shape: f32[4,16,16], index: 2, kind: input, shape index: {}]
  %s3 = inlined_call_operand.vmem [shape: f32[32,24], index: 3, kind: output, shape index: {}]
  %s4 = sld [smem:[#allocation0]]
  $region22: #{tpu_custom_call.1} parent=0
    _
  %s6 = ssub.s32 1, %s4
  %s7 = scalar_select 0, %s6, %s4
  // Predicated region
  $region2: #{tpu_custom_call.1} parent=0 // pred_check
    _
  $region3: #{tpu_custom_call.1} parent=0 // pred_check_branch
    %9 = sbr.rel (0) target = $region5
  $region4: #{tpu_custom_call.1} parent=0 // pred_region
    _
  $region5: #{tpu_custom_call.1} parent=0 // pred_fallthru
    _
  // Predicated region
  $region6: #{tpu_custom_call.1} parent=0 // pred_check
    _
  $region7: #{tpu_custom_call.1} parent=0 // pred_check_branch
    %11 = sbr.rel (0) target = $region9
  $region8: #{tpu_custom_call.1} parent=0 // pred_region
    _
  $region9: #{tpu_custom_call.1} parent=0 // pred_fallthru
    _
  // Predicated region
  $region10: #{tpu_custom_call.1} parent=0 // pred_check
    _
  $region11: #{tpu_custom_call.1} parent=0 // pred_check_branch
    %13 = sbr.rel (0) target = $region13
  $region12: #{tpu_custom_call.1} parent=0 // pred_region
    _
  $region13: #{tpu_custom_call.1} parent=0 // pred_fallthru
    _
  %v14 = vld [vmem:[%s0] sm:$0xff]
  %v15 = vld [vmem:[%s0 + $0x8] sm:$0xff]
  %v16 = vld [vmem:[%s0 + $0x10] sm:$0xff]
  %v17 = vld [vmem:[%s1] sm:$0xff]
  %v18 = vld [vmem:[%s1 + $0x8] sm:$0xff]
  %v19 = vld [vmem:[%s1 + $0x10] sm:$0xff]
  %v20 = vld [vmem:[%s1 + $0x18] sm:$0xff]
  %v21 = vld [vmem:[%s1 + $0x20] sm:$0xff]
  %v22 = vld [vmem:[%s1 + $0x28] sm:$0xff]
  %v23 = vld [vmem:[%s2] sm:$0xff]
  %v24 = vld [vmem:[%s2 + $0x8] sm:$0xff]
  %vm25 = vcmask 130048
  %v27 = vsel %vm25, %v14, 0
  %v30 = vsel %vm25, %v15, 0
  %v33 = vsel %vm25, %v16, 0
  %35 = vmatprep.subr.mxu0 0.0
  %36 = vmatpush1.msra.mxu0 %v23
  %37 = vmatprep.subr.mxu0 0.0
  %38 = vmatpush1.msra.mxu0 %v24
  %39 = vmatprep.subr.mxu0 0.0
  %40 = vmatpush1.msra.mxu0 0.0
  %41 = vmatprep.subr.mxu0 0.0
  %42 = vmatpush1.msra.mxu0 0.0
  %43 = vmatprep.subr.mxu0 0.0
  %44 = vmatpush1.msra.mxu0 0.0
  %45 = vmatprep.subr.mxu0 0.0
  %46 = vmatpush1.msra.mxu0 0.0
  %47 = vmatprep.subr.mxu0 0.0
  %48 = vmatpush1.msra.mxu0 0.0
  %49 = vmatprep.subr.mxu0 0.0
  %50 = vmatpush1.msra.mxu0 0.0
  %51 = vmatprep.subr.mxu0 0.0
  %52 = vmatpush1.msra.mxu0 0.0
  %53 = vmatprep.subr.mxu0 0.0
  %54 = vmatpush1.msra.mxu0 0.0
  %55 = vmatprep.subr.mxu0 0.0
  %56 = vmatpush1.msra.mxu0 0.0
  %57 = vmatprep.subr.mxu0 0.0
  %58 = vmatpush1.msra.mxu0 0.0
  %59 = vmatprep.subr.mxu0 0.0
  %60 = vmatpush1.msra.mxu0 0.0
  %61 = vmatprep.subr.mxu0 0.0
  %62 = vmatpush1.msra.mxu0 0.0
  %63 = vmatprep.subr.mxu0 0.0
  %64 = vmatpush1.msra.mxu0 0.0
  %65 = vmatprep.subr.mxu0 0.0
  %66 = vmatpush1.msra.mxu0 0.0
  %67 = vmatprep.subr.mxu0 0.0
  %68 = vmatpush1.msra.mxu0 0.0
  %69 = vmatprep.subr.mxu0 0.0
  %70 = vmatpush1.msra.mxu0 0.0
  %71 = vmatprep.subr.mxu0 0.0
  %72 = vmatpush1.msra.mxu0 0.0
  %73 = vmatprep.subr.mxu0 0.0
  %74 = vmatpush1.msra.mxu0 0.0
  %75 = vmatprep.subr.mxu0 0.0
  %76 = vmatpush1.msra.mxu0 0.0
  %77 = vmatprep.subr.mxu0 0.0
  %78 = vmatpush1.msra.mxu0 0.0
  %79 = vmatprep.subr.mxu0 0.0
  %80 = vmatpush1.msra.mxu0 0.0
  %81 = vmatprep.subr.mxu0 0.0
  %82 = vmatpush1.msra.mxu0 0.0
  %83 = vmatprep.subr.mxu0 0.0
  %84 = vmatpush1.msra.mxu0 0.0
  %85 = vmatprep.subr.mxu0 0.0
  %86 = vmatpush1.msra.mxu0 0.0
  %87 = vmatprep.subr.mxu0 0.0
  %88 = vmatpush1.msra.mxu0 0.0
  %89 = vmatprep.subr.mxu0 0.0
  %90 = vmatpush1.msra.mxu0 0.0
  %91 = vmatprep.subr.mxu0 0.0
  %92 = vmatpush1.msra.mxu0 0.0
  %93 = vmatprep.subr.mxu0 0.0
  %94 = vmatpush1.msra.mxu0 0.0
  %95 = vmatprep.subr.mxu0 0.0
  %96 = vmatpush1.msra.mxu0 0.0
  %97 = vmatprep.subr.mxu0 0.0
  %98 = vmatpush1.msra.mxu0 0.0
  %99 = vmatprep.mubr.f32.mxu0 0.0
  %100 = vmatmul.mubr.f32.gmra.mrb[0].mxu0 %v27
  %v101 = vpop.f32.mrb[0].mxu0
  %v102 = vadd.f32 0.0, %v101
  %v103 = vpop.f32.mrb[0].mxu0
  %104 = vmatprep.mubr.f32.mxu0 0.0
  %105 = vmatmul.mubr.f32.gmra.mrb[0].mxu0 %v30
  %v106 = vpop.f32.mrb[0].mxu0
  %v107 = vadd.f32 0.0, %v106
  %v108 = vpop.f32.mrb[0].mxu0
  %109 = vmatprep.mubr.f32.mxu0 0.0
  %110 = vmatmul.mubr.f32.gmra.mrb[0].mxu0 %v33
  %v111 = vpop.f32.mrb[0].mxu0
  %v112 = vadd.f32 0.0, %v111
  %v113 = vpop.f32.mrb[0].mxu0
  %114 = vdwg.mxu0
  %v116 = vsel %vm25, %v102, 0
  %118 = vmatprep.subr.mxu0 0.0
  %119 = vmatpush1.msra.mxu0 %v17
  %120 = vmatprep.subr.mxu0 0.0
  %121 = vmatpush1.msra.mxu0 %v18
  %122 = vmatprep.subr.mxu0 0.0
  %123 = vmatpush1.msra.mxu0 0.0
  %124 = vmatprep.subr.mxu0 0.0
  %125 = vmatpush1.msra.mxu0 0.0
  %126 = vmatprep.subr.mxu0 0.0
  %127 = vmatpush1.msra.mxu0 0.0
  %128 = vmatprep.subr.mxu0 0.0
  %129 = vmatpush1.msra.mxu0 0.0
  %130 = vmatprep.subr.mxu0 0.0
  %131 = vmatpush1.msra.mxu0 0.0
  %132 = vmatprep.subr.mxu0 0.0
  %133 = vmatpush1.msra.mxu0 0.0
  %134 = vmatprep.subr.mxu0 0.0
  %135 = vmatpush1.msra.mxu0 0.0
  %136 = vmatprep.subr.mxu0 0.0
  %137 = vmatpush1.msra.mxu0 0.0
  %138 = vmatprep.subr.mxu0 0.0
  %139 = vmatpush1.msra.mxu0 0.0
  %140 = vmatprep.subr.mxu0 0.0
  %141 = vmatpush1.msra.mxu0 0.0
  %142 = vmatprep.subr.mxu0 0.0
  %143 = vmatpush1.msra.mxu0 0.0
  %144 = vmatprep.subr.mxu0 0.0
  %145 = vmatpush1.msra.mxu0 0.0
  %146 = vmatprep.subr.mxu0 0.0
  %147 = vmatpush1.msra.mxu0 0.0
  %148 = vmatprep.subr.mxu0 0.0
  %149 = vmatpush1.msra.mxu0 0.0
  %150 = vmatprep.subr.mxu0 0.0
  %151 = vmatpush1.msra.mxu0 0.0
  %152 = vmatprep.subr.mxu0 0.0
  %153 = vmatpush1.msra.mxu0 0.0
  %154 = vmatprep.subr.mxu0 0.0
  %155 = vmatpush1.msra.mxu0 0.0
  %156 = vmatprep.subr.mxu0 0.0
  %157 = vmatpush1.msra.mxu0 0.0
  %158 = vmatprep.subr.mxu0 0.0
  %159 = vmatpush1.msra.mxu0 0.0
  %160 = vmatprep.subr.mxu0 0.0
  %161 = vmatpush1.msra.mxu0 0.0
  %162 = vmatprep.subr.mxu0 0.0
  %163 = vmatpush1.msra.mxu0 0.0
  %164 = vmatprep.subr.mxu0 0.0
  %165 = vmatpush1.msra.mxu0 0.0
  %166 = vmatprep.subr.mxu0 0.0
  %167 = vmatpush1.msra.mxu0 0.0
  %168 = vmatprep.subr.mxu0 0.0
  %169 = vmatpush1.msra.mxu0 0.0
  %170 = vmatprep.subr.mxu0 0.0
  %171 = vmatpush1.msra.mxu0 0.0
  %172 = vmatprep.subr.mxu0 0.0
  %173 = vmatpush1.msra.mxu0 0.0
  %174 = vmatprep.subr.mxu0 0.0
  %175 = vmatpush1.msra.mxu0 0.0
  %176 = vmatprep.subr.mxu0 0.0
  %177 = vmatpush1.msra.mxu0 0.0
  %178 = vmatprep.subr.mxu0 0.0
  %179 = vmatpush1.msra.mxu0 0.0
  %180 = vmatprep.subr.mxu0 0.0
  %181 = vmatpush1.msra.mxu0 0.0
  %182 = vmatprep.mubr.f32.mxu0 0.0
  %183 = vmatmul.mubr.f32.gmra.mrb[0].mxu0 %v116
  %v184 = vpop.f32.mrb[0].mxu0
  %v185 = vadd.f32 0.0, %v184
  %v186 = vpop.f32.mrb[0].mxu0
  %187 = vdwg.mxu0
  %v189 = vsel %vm25, %v107, 0
  %191 = vmatprep.subr.mxu0 0.0
  %192 = vmatpush1.msra.mxu0 %v19
  %193 = vmatprep.subr.mxu0 0.0
  %194 = vmatpush1.msra.mxu0 %v20
  %195 = vmatprep.subr.mxu0 0.0
  %196 = vmatpush1.msra.mxu0 0.0
  %197 = vmatprep.subr.mxu0 0.0
  %198 = vmatpush1.msra.mxu0 0.0
  %199 = vmatprep.subr.mxu0 0.0
  %200 = vmatpush1.msra.mxu0 0.0
  %201 = vmatprep.subr.mxu0 0.0
  %202 = vmatpush1.msra.mxu0 0.0
  %203 = vmatprep.subr.mxu0 0.0
  %204 = vmatpush1.msra.mxu0 0.0
  %205 = vmatprep.subr.mxu0 0.0
  %206 = vmatpush1.msra.mxu0 0.0
  %207 = vmatprep.subr.mxu0 0.0
  %208 = vmatpush1.msra.mxu0 0.0
  %209 = vmatprep.subr.mxu0 0.0
  %210 = vmatpush1.msra.mxu0 0.0
  %211 = vmatprep.subr.mxu0 0.0
  %212 = vmatpush1.msra.mxu0 0.0
  %213 = vmatprep.subr.mxu0 0.0
  %214 = vmatpush1.msra.mxu0 0.0
  %215 = vmatprep.subr.mxu0 0.0
  %216 = vmatpush1.msra.mxu0 0.0
  %217 = vmatprep.subr.mxu0 0.0
  %218 = vmatpush1.msra.mxu0 0.0
  %219 = vmatprep.subr.mxu0 0.0
  %220 = vmatpush1.msra.mxu0 0.0
  %221 = vmatprep.subr.mxu0 0.0
  %222 = vmatpush1.msra.mxu0 0.0
  %223 = vmatprep.subr.mxu0 0.0
  %224 = vmatpush1.msra.mxu0 0.0
  %225 = vmatprep.subr.mxu0 0.0
  %226 = vmatpush1.msra.mxu0 0.0
  %227 = vmatprep.subr.mxu0 0.0
  %228 = vmatpush1.msra.mxu0 0.0
  %229 = vmatprep.subr.mxu0 0.0
  %230 = vmatpush1.msra.mxu0 0.0
  %231 = vmatprep.subr.mxu0 0.0
  %232 = vmatpush1.msra.mxu0 0.0
  %233 = vmatprep.subr.mxu0 0.0
  %234 = vmatpush1.msra.mxu0 0.0
  %235 = vmatprep.subr.mxu0 0.0
  %236 = vmatpush1.msra.mxu0 0.0
  %237 = vmatprep.subr.mxu0 0.0
  %238 = vmatpush1.msra.mxu0 0.0
  %239 = vmatprep.subr.mxu0 0.0
  %240 = vmatpush1.msra.mxu0 0.0
  %241 = vmatprep.subr.mxu0 0.0
  %242 = vmatpush1.msra.mxu0 0.0
  %243 = vmatprep.subr.mxu0 0.0
  %244 = vmatpush1.msra.mxu0 0.0
  %245 = vmatprep.subr.mxu0 0.0
  %246 = vmatpush1.msra.mxu0 0.0
  %247 = vmatprep.subr.mxu0 0.0
  %248 = vmatpush1.msra.mxu0 0.0
  %249 = vmatprep.subr.mxu0 0.0
  %250 = vmatpush1.msra.mxu0 0.0
  %251 = vmatprep.subr.mxu0 0.0
  %252 = vmatpush1.msra.mxu0 0.0
  %253 = vmatprep.subr.mxu0 0.0
  %254 = vmatpush1.msra.mxu0 0.0
  %255 = vmatprep.mubr.f32.mxu0 0.0
  %256 = vmatmul.mubr.f32.gmra.mrb[0].mxu0 %v189
  %v257 = vpop.f32.mrb[0].mxu0
  %v258 = vadd.f32 0.0, %v257
  %v259 = vpop.f32.mrb[0].mxu0
  %260 = vdwg.mxu0
  %v262 = vsel %vm25, %v112, 0
  %264 = vmatprep.subr.mxu0 0.0
  %265 = vmatpush1.msra.mxu0 %v21
  %266 = vmatprep.subr.mxu0 0.0
  %267 = vmatpush1.msra.mxu0 %v22
  %268 = vmatprep.subr.mxu0 0.0
  %269 = vmatpush1.msra.mxu0 0.0
  %270 = vmatprep.subr.mxu0 0.0
  %271 = vmatpush1.msra.mxu0 0.0
  %272 = vmatprep.subr.mxu0 0.0
  %273 = vmatpush1.msra.mxu0 0.0
  %274 = vmatprep.subr.mxu0 0.0
  %275 = vmatpush1.msra.mxu0 0.0
  %276 = vmatprep.subr.mxu0 0.0
  %277 = vmatpush1.msra.mxu0 0.0
  %278 = vmatprep.subr.mxu0 0.0
  %279 = vmatpush1.msra.mxu0 0.0
  %280 = vmatprep.subr.mxu0 0.0
  %281 = vmatpush1.msra.mxu0 0.0
  %282 = vmatprep.subr.mxu0 0.0
  %283 = vmatpush1.msra.mxu0 0.0
  %284 = vmatprep.subr.mxu0 0.0
  %285 = vmatpush1.msra.mxu0 0.0
  %286 = vmatprep.subr.mxu0 0.0
  %287 = vmatpush1.msra.mxu0 0.0
  %288 = vmatprep.subr.mxu0 0.0
  %289 = vmatpush1.msra.mxu0 0.0
  %290 = vmatprep.subr.mxu0 0.0
  %291 = vmatpush1.msra.mxu0 0.0
  %292 = vmatprep.subr.mxu0 0.0
  %293 = vmatpush1.msra.mxu0 0.0
  %294 = vmatprep.subr.mxu0 0.0
  %295 = vmatpush1.msra.mxu0 0.0
  %296 = vmatprep.subr.mxu0 0.0
  %297 = vmatpush1.msra.mxu0 0.0
  %298 = vmatprep.subr.mxu0 0.0
  %299 = vmatpush1.msra.mxu0 0.0
  %300 = vmatprep.subr.mxu0 0.0
  %301 = vmatpush1.msra.mxu0 0.0
  %302 = vmatprep.subr.mxu0 0.0
  %303 = vmatpush1.msra.mxu0 0.0
  %304 = vmatprep.subr.mxu0 0.0
  %305 = vmatpush1.msra.mxu0 0.0
  %306 = vmatprep.subr.mxu0 0.0
  %307 = vmatpush1.msra.mxu0 0.0
  %308 = vmatprep.subr.mxu0 0.0
  %309 = vmatpush1.msra.mxu0 0.0
  %310 = vmatprep.subr.mxu0 0.0
  %311 = vmatpush1.msra.mxu0 0.0
  %312 = vmatprep.subr.mxu0 0.0
  %313 = vmatpush1.msra.mxu0 0.0
  %314 = vmatprep.subr.mxu0 0.0
  %315 = vmatpush1.msra.mxu0 0.0
  %316 = vmatprep.subr.mxu0 0.0
  %317 = vmatpush1.msra.mxu0 0.0
  %318 = vmatprep.subr.mxu0 0.0
  %319 = vmatpush1.msra.mxu0 0.0
  %320 = vmatprep.subr.mxu0 0.0
  %321 = vmatpush1.msra.mxu0 0.0
  %322 = vmatprep.subr.mxu0 0.0
  %323 = vmatpush1.msra.mxu0 0.0
  %324 = vmatprep.subr.mxu0 0.0
  %325 = vmatpush1.msra.mxu0 0.0
  %326 = vmatprep.subr.mxu0 0.0
  %327 = vmatpush1.msra.mxu0 0.0
  %328 = vmatprep.mubr.f32.mxu0 0.0
  %329 = vmatmul.mubr.f32.gmra.mrb[0].mxu0 %v262
  %v330 = vpop.f32.mrb[0].mxu0
  %v331 = vadd.f32 0.0, %v330
  %v332 = vpop.f32.mrb[0].mxu0
  %333 = vdwg.mxu0
  %vm334 = vcmask 64512
  %335 = vst.msk [vmem:[%s3] sm:$0xff] %vm334, %v185
  %337 = vrot.lane.b32.xlu0 %v258, 8
  %v338 = vpop.permute.xlu0 %337
  %vm340 = vcmask 130112
  %341 = vst.msk [vmem:[%s3] sm:$0xff] %vm340, %v338
  %343 = vrot.lane.b32.xlu0 %v331, 16
  %v344 = vpop.permute.xlu0 %343
  %vm346 = vcmask 195712
  %347 = vst.msk [vmem:[%s3] sm:$0xff] %vm346, %v344
  %s348 = scalar_lea.vmem %s2, 16
  %v349 = vld [vmem:[%s348] sm:$0xff]
  %v350 = vld [vmem:[%s348 + $0x8] sm:$0xff]
  %351 = vmatprep.subr.mxu0 0.0
  %352 = vmatpush1.msra.mxu0 %v349
  %353 = vmatprep.subr.mxu0 0.0
  %354 = vmatpush1.msra.mxu0 %v350
  %355 = vmatprep.subr.mxu0 0.0
  %356 = vmatpush1.msra.mxu0 0.0
  %357 = vmatprep.subr.mxu0 0.0
  %358 = vmatpush1.msra.mxu0 0.0
  %359 = vmatprep.subr.mxu0 0.0
  %360 = vmatpush1.msra.mxu0 0.0
  %361 = vmatprep.subr.mxu0 0.0
  %362 = vmatpush1.msra.mxu0 0.0
  %363 = vmatprep.subr.mxu0 0.0
  %364 = vmatpush1.msra.mxu0 0.0
  %365 = vmatprep.subr.mxu0 0.0
  %366 = vmatpush1.msra.mxu0 0.0
  %367 = vmatprep.subr.mxu0 0.0
  %368 = vmatpush1.msra.mxu0 0.0
  %369 = vmatprep.subr.mxu0 0.0
  %370 = vmatpush1.msra.mxu0 0.0
  %371 = vmatprep.subr.mxu0 0.0
  %372 = vmatpush1.msra.mxu0 0.0
  %373 = vmatprep.subr.mxu0 0.0
  %374 = vmatpush1.msra.mxu0 0.0
  %375 = vmatprep.subr.mxu0 0.0
  %376 = vmatpush1.msra.mxu0 0.0
  %377 = vmatprep.subr.mxu0 0.0
  %378 = vmatpush1.msra.mxu0 0.0
  %379 = vmatprep.subr.mxu0 0.0
  %380 = vmatpush1.msra.mxu0 0.0
  %381 = vmatprep.subr.mxu0 0.0
  %382 = vmatpush1.msra.mxu0 0.0
  %383 = vmatprep.subr.mxu0 0.0
  %384 = vmatpush1.msra.mxu0 0.0
  %385 = vmatprep.subr.mxu0 0.0
  %386 = vmatpush1.msra.mxu0 0.0
  %387 = vmatprep.subr.mxu0 0.0
  %388 = vmatpush1.msra.mxu0 0.0
  %389 = vmatprep.subr.mxu0 0.0
  %390 = vmatpush1.msra.mxu0 0.0
  %391 = vmatprep.subr.mxu0 0.0
  %392 = vmatpush1.msra.mxu0 0.0
  %393 = vmatprep.subr.mxu0 0.0
  %394 = vmatpush1.msra.mxu0 0.0
  %395 = vmatprep.subr.mxu0 0.0
  %396 = vmatpush1.msra.mxu0 0.0
  %397 = vmatprep.subr.mxu0 0.0
  %398 = vmatpush1.msra.mxu0 0.0
  %399 = vmatprep.subr.mxu0 0.0
  %400 = vmatpush1.msra.mxu0 0.0
  %401 = vmatprep.subr.mxu0 0.0
  %402 = vmatpush1.msra.mxu0 0.0
  %403 = vmatprep.subr.mxu0 0.0
  %404 = vmatpush1.msra.mxu0 0.0
  %405 = vmatprep.subr.mxu0 0.0
  %406 = vmatpush1.msra.mxu0 0.0
  %407 = vmatprep.subr.mxu0 0.0
  %408 = vmatpush1.msra.mxu0 0.0
  %409 = vmatprep.subr.mxu0 0.0
  %410 = vmatpush1.msra.mxu0 0.0
  %411 = vmatprep.subr.mxu0 0.0
  %412 = vmatpush1.msra.mxu0 0.0
  %413 = vmatprep.subr.mxu0 0.0
  %414 = vmatpush1.msra.mxu0 0.0
  %415 = vmatprep.mubr.f32.mxu0 0.0
  %416 = vmatmul.mubr.f32.gmra.mrb[0].mxu0 %v27
  %v417 = vpop.f32.mrb[0].mxu0
  %v418 = vadd.f32 0.0, %v417
  %v419 = vpop.f32.mrb[0].mxu0
  %420 = vmatprep.mubr.f32.mxu0 0.0
  %421 = vmatmul.mubr.f32.gmra.mrb[0].mxu0 %v30
  %v422 = vpop.f32.mrb[0].mxu0
  %v423 = vadd.f32 0.0, %v422
  %v424 = vpop.f32.mrb[0].mxu0
  %425 = vmatprep.mubr.f32.mxu0 0.0
  %426 = vmatmul.mubr.f32.gmra.mrb[0].mxu0 %v33
  %v427 = vpop.f32.mrb[0].mxu0
  %v428 = vadd.f32 0.0, %v427
  %v429 = vpop.f32.mrb[0].mxu0
  %430 = vdwg.mxu0
  %v432 = vsel %vm25, %v418, 0
  %434 = vmatprep.subr.mxu0 0.0
  %435 = vmatpush1.msra.mxu0 %v17
  %436 = vmatprep.subr.mxu0 0.0
  %437 = vmatpush1.msra.mxu0 %v18
  %438 = vmatprep.subr.mxu0 0.0
  %439 = vmatpush1.msra.mxu0 0.0
  %440 = vmatprep.subr.mxu0 0.0
  %441 = vmatpush1.msra.mxu0 0.0
  %442 = vmatprep.subr.mxu0 0.0
  %443 = vmatpush1.msra.mxu0 0.0
  %444 = vmatprep.subr.mxu0 0.0
  %445 = vmatpush1.msra.mxu0 0.0
  %446 = vmatprep.subr.mxu0 0.0
  %447 = vmatpush1.msra.mxu0 0.0
  %448 = vmatprep.subr.mxu0 0.0
  %449 = vmatpush1.msra.mxu0 0.0
  %450 = vmatprep.subr.mxu0 0.0
  %451 = vmatpush1.msra.mxu0 0.0
  %452 = vmatprep.subr.mxu0 0.0
  %453 = vmatpush1.msra.mxu0 0.0
  %454 = vmatprep.subr.mxu0 0.0
  %455 = vmatpush1.msra.mxu0 0.0
  %456 = vmatprep.subr.mxu0 0.0
  %457 = vmatpush1.msra.mxu0 0.0
  %458 = vmatprep.subr.mxu0 0.0
  %459 = vmatpush1.msra.mxu0 0.0
  %460 = vmatprep.subr.mxu0 0.0
  %461 = vmatpush1.msra.mxu0 0.0
  %462 = vmatprep.subr.mxu0 0.0
  %463 = vmatpush1.msra.mxu0 0.0
  %464 = vmatprep.subr.mxu0 0.0
  %465 = vmatpush1.msra.mxu0 0.0
  %466 = vmatprep.subr.mxu0 0.0
  %467 = vmatpush1.msra.mxu0 0.0
  %468 = vmatprep.subr.mxu0 0.0
  %469 = vmatpush1.msra.mxu0 0.0
  %470 = vmatprep.subr.mxu0 0.0
  %471 = vmatpush1.msra.mxu0 0.0
  %472 = vmatprep.subr.mxu0 0.0
  %473 = vmatpush1.msra.mxu0 0.0
  %474 = vmatprep.subr.mxu0 0.0
  %475 = vmatpush1.msra.mxu0 0.0
  %476 = vmatprep.subr.mxu0 0.0
  %477 = vmatpush1.msra.mxu0 0.0
  %478 = vmatprep.subr.mxu0 0.0
  %479 = vmatpush1.msra.mxu0 0.0
  %480 = vmatprep.subr.mxu0 0.0
  %481 = vmatpush1.msra.mxu0 0.0
  %482 = vmatprep.subr.mxu0 0.0
  %483 = vmatpush1.msra.mxu0 0.0
  %484 = vmatprep.subr.mxu0 0.0
  %485 = vmatpush1.msra.mxu0 0.0
  %486 = vmatprep.subr.mxu0 0.0
  %487 = vmatpush1.msra.mxu0 0.0
  %488 = vmatprep.subr.mxu0 0.0
  %489 = vmatpush1.msra.mxu0 0.0
  %490 = vmatprep.subr.mxu0 0.0
  %491 = vmatpush1.msra.mxu0 0.0
  %492 = vmatprep.subr.mxu0 0.0
  %493 = vmatpush1.msra.mxu0 0.0
  %494 = vmatprep.subr.mxu0 0.0
  %495 = vmatpush1.msra.mxu0 0.0
  %496 = vmatprep.subr.mxu0 0.0
  %497 = vmatpush1.msra.mxu0 0.0
  %498 = vmatprep.mubr.f32.mxu0 0.0
  %499 = vmatmul.mubr.f32.gmra.mrb[0].mxu0 %v432
  %v500 = vpop.f32.mrb[0].mxu0
  %v501 = vadd.f32 0.0, %v500
  %v502 = vpop.f32.mrb[0].mxu0
  %503 = vdwg.mxu0
  %v505 = vsel %vm25, %v423, 0
  %507 = vmatprep.subr.mxu0 0.0
  %508 = vmatpush1.msra.mxu0 %v19
  %509 = vmatprep.subr.mxu0 0.0
  %510 = vmatpush1.msra.mxu0 %v20
  %511 = vmatprep.subr.mxu0 0.0
  %512 = vmatpush1.msra.mxu0 0.0
  %513 = vmatprep.subr.mxu0 0.0
  %514 = vmatpush1.msra.mxu0 0.0
  %515 = vmatprep.subr.mxu0 0.0
  %516 = vmatpush1.msra.mxu0 0.0
  %517 = vmatprep.subr.mxu0 0.0
  %518 = vmatpush1.msra.mxu0 0.0
  %519 = vmatprep.subr.mxu0 0.0
  %520 = vmatpush1.msra.mxu0 0.0
  %521 = vmatprep.subr.mxu0 0.0
  %522 = vmatpush1.msra.mxu0 0.0
  %523 = vmatprep.subr.mxu0 0.0
  %524 = vmatpush1.msra.mxu0 0.0
  %525 = vmatprep.subr.mxu0 0.0
  %526 = vmatpush1.msra.mxu0 0.0
  %527 = vmatprep.subr.mxu0 0.0
  %528 = vmatpush1.msra.mxu0 0.0
  %529 = vmatprep.subr.mxu0 0.0
  %530 = vmatpush1.msra.mxu0 0.0
  %531 = vmatprep.subr.mxu0 0.0
  %532 = vmatpush1.msra.mxu0 0.0
  %533 = vmatprep.subr.mxu0 0.0
  %534 = vmatpush1.msra.mxu0 0.0
  %535 = vmatprep.subr.mxu0 0.0
  %536 = vmatpush1.msra.mxu0 0.0
  %537 = vmatprep.subr.mxu0 0.0
  %538 = vmatpush1.msra.mxu0 0.0
  %539 = vmatprep.subr.mxu0 0.0
  %540 = vmatpush1.msra.mxu0 0.0
  %541 = vmatprep.subr.mxu0 0.0
  %542 = vmatpush1.msra.mxu0 0.0
  %543 = vmatprep.subr.mxu0 0.0
  %544 = vmatpush1.msra.mxu0 0.0
  %545 = vmatprep.subr.mxu0 0.0
  %546 = vmatpush1.msra.mxu0 0.0
  %547 = vmatprep.subr.mxu0 0.0
  %548 = vmatpush1.msra.mxu0 0.0
  %549 = vmatprep.subr.mxu0 0.0
  %550 = vmatpush1.msra.mxu0 0.0
  %551 = vmatprep.subr.mxu0 0.0
  %552 = vmatpush1.msra.mxu0 0.0
  %553 = vmatprep.subr.mxu0 0.0
  %554 = vmatpush1.msra.mxu0 0.0
  %555 = vmatprep.subr.mxu0 0.0
  %556 = vmatpush1.msra.mxu0 0.0
  %557 = vmatprep.subr.mxu0 0.0
  %558 = vmatpush1.msra.mxu0 0.0
  %559 = vmatprep.subr.mxu0 0.0
  %560 = vmatpush1.msra.mxu0 0.0
  %561 = vmatprep.subr.mxu0 0.0
  %562 = vmatpush1.msra.mxu0 0.0
  %563 = vmatprep.subr.mxu0 0.0
  %564 = vmatpush1.msra.mxu0 0.0
  %565 = vmatprep.subr.mxu0 0.0
  %566 = vmatpush1.msra.mxu0 0.0
  %567 = vmatprep.subr.mxu0 0.0
  %568 = vmatpush1.msra.mxu0 0.0
  %569 = vmatprep.subr.mxu0 0.0
  %570 = vmatpush1.msra.mxu0 0.0
  %571 = vmatprep.mubr.f32.mxu0 0.0
  %572 = vmatmul.mubr.f32.gmra.mrb[0].mxu0 %v505
  %v573 = vpop.f32.mrb[0].mxu0
  %v574 = vadd.f32 0.0, %v573
  %v575 = vpop.f32.mrb[0].mxu0
  %576 = vdwg.mxu0
  %v578 = vsel %vm25, %v428, 0
  %580 = vmatprep.subr.mxu0 0.0
  %581 = vmatpush1.msra.mxu0 %v21
  %582 = vmatprep.subr.mxu0 0.0
  %583 = vmatpush1.msra.mxu0 %v22
  %584 = vmatprep.subr.mxu0 0.0
  %585 = vmatpush1.msra.mxu0 0.0
  %586 = vmatprep.subr.mxu0 0.0
  %587 = vmatpush1.msra.mxu0 0.0
  %588 = vmatprep.subr.mxu0 0.0
  %589 = vmatpush1.msra.mxu0 0.0
  %590 = vmatprep.subr.mxu0 0.0
  %591 = vmatpush1.msra.mxu0 0.0
  %592 = vmatprep.subr.mxu0 0.0
  %593 = vmatpush1.msra.mxu0 0.0
  %594 = vmatprep.subr.mxu0 0.0
  %595 = vmatpush1.msra.mxu0 0.0
  %596 = vmatprep.subr.mxu0 0.0
  %597 = vmatpush1.msra.mxu0 0.0
  %598 = vmatprep.subr.mxu0 0.0
  %599 = vmatpush1.msra.mxu0 0.0
  %600 = vmatprep.subr.mxu0 0.0
  %601 = vmatpush1.msra.mxu0 0.0
  %602 = vmatprep.subr.mxu0 0.0
  %603 = vmatpush1.msra.mxu0 0.0
  %604 = vmatprep.subr.mxu0 0.0
  %605 = vmatpush1.msra.mxu0 0.0
  %606 = vmatprep.subr.mxu0 0.0
  %607 = vmatpush1.msra.mxu0 0.0
  %608 = vmatprep.subr.mxu0 0.0
  %609 = vmatpush1.msra.mxu0 0.0
  %610 = vmatprep.subr.mxu0 0.0
  %611 = vmatpush1.msra.mxu0 0.0
  %612 = vmatprep.subr.mxu0 0.0
  %613 = vmatpush1.msra.mxu0 0.0
  %614 = vmatprep.subr.mxu0 0.0
  %615 = vmatpush1.msra.mxu0 0.0
  %616 = vmatprep.subr.mxu0 0.0
  %617 = vmatpush1.msra.mxu0 0.0
  %618 = vmatprep.subr.mxu0 0.0
  %619 = vmatpush1.msra.mxu0 0.0
  %620 = vmatprep.subr.mxu0 0.0
  %621 = vmatpush1.msra.mxu0 0.0
  %622 = vmatprep.subr.mxu0 0.0
  %623 = vmatpush1.msra.mxu0 0.0
  %624 = vmatprep.subr.mxu0 0.0
  %625 = vmatpush1.msra.mxu0 0.0
  %626 = vmatprep.subr.mxu0 0.0
  %627 = vmatpush1.msra.mxu0 0.0
  %628 = vmatprep.subr.mxu0 0.0
  %629 = vmatpush1.msra.mxu0 0.0
  %630 = vmatprep.subr.mxu0 0.0
  %631 = vmatpush1.msra.mxu0 0.0
  %632 = vmatprep.subr.mxu0 0.0
  %633 = vmatpush1.msra.mxu0 0.0
  %634 = vmatprep.subr.mxu0 0.0
  %635 = vmatpush1.msra.mxu0 0.0
  %636 = vmatprep.subr.mxu0 0.0
  %637 = vmatpush1.msra.mxu0 0.0
  %638 = vmatprep.subr.mxu0 0.0
  %639 = vmatpush1.msra.mxu0 0.0
  %640 = vmatprep.subr.mxu0 0.0
  %641 = vmatpush1.msra.mxu0 0.0
  %642 = vmatprep.subr.mxu0 0.0
  %643 = vmatpush1.msra.mxu0 0.0
  %644 = vmatprep.mubr.f32.mxu0 0.0
  %645 = vmatmul.mubr.f32.gmra.mrb[0].mxu0 %v578
  %v646 = vpop.f32.mrb[0].mxu0
  %v647 = vadd.f32 0.0, %v646
  %v648 = vpop.f32.mrb[0].mxu0
  %649 = vdwg.mxu0
  %650 = vst.msk [vmem:[%s3 + $0x8] sm:$0xff] %vm334, %v501
  %652 = vrot.lane.b32.xlu0 %v574, 8
  %v653 = vpop.permute.xlu0 %652
  %655 = vst.msk [vmem:[%s3 + $0x8] sm:$0xff] %vm340, %v653
  %657 = vrot.lane.b32.xlu0 %v647, 16
  %v658 = vpop.permute.xlu0 %657
  %660 = vst.msk [vmem:[%s3 + $0x8] sm:$0xff] %vm346, %v658
  %s661 = scalar_lea.vmem %s2, 32
  %v662 = vld [vmem:[%s661] sm:$0xff]
  %v663 = vld [vmem:[%s661 + $0x8] sm:$0xff]
  %664 = vmatprep.subr.mxu0 0.0
  %665 = vmatpush1.msra.mxu0 %v662
  %666 = vmatprep.subr.mxu0 0.0
  %667 = vmatpush1.msra.mxu0 %v663
  %668 = vmatprep.subr.mxu0 0.0
  %669 = vmatpush1.msra.mxu0 0.0
  %670 = vmatprep.subr.mxu0 0.0
  %671 = vmatpush1.msra.mxu0 0.0
  %672 = vmatprep.subr.mxu0 0.0
  %673 = vmatpush1.msra.mxu0 0.0
  %674 = vmatprep.subr.mxu0 0.0
  %675 = vmatpush1.msra.mxu0 0.0
  %676 = vmatprep.subr.mxu0 0.0
  %677 = vmatpush1.msra.mxu0 0.0
  %678 = vmatprep.subr.mxu0 0.0
  %679 = vmatpush1.msra.mxu0 0.0
  %680 = vmatprep.subr.mxu0 0.0
  %681 = vmatpush1.msra.mxu0 0.0
  %682 = vmatprep.subr.mxu0 0.0
  %683 = vmatpush1.msra.mxu0 0.0
  %684 = vmatprep.subr.mxu0 0.0
  %685 = vmatpush1.msra.mxu0 0.0
  %686 = vmatprep.subr.mxu0 0.0
  %687 = vmatpush1.msra.mxu0 0.0
  %688 = vmatprep.subr.mxu0 0.0
  %689 = vmatpush1.msra.mxu0 0.0
  %690 = vmatprep.subr.mxu0 0.0
  %691 = vmatpush1.msra.mxu0 0.0
  %692 = vmatprep.subr.mxu0 0.0
  %693 = vmatpush1.msra.mxu0 0.0
  %694 = vmatprep.subr.mxu0 0.0
  %695 = vmatpush1.msra.mxu0 0.0
  %696 = vmatprep.subr.mxu0 0.0
  %697 = vmatpush1.msra.mxu0 0.0
  %698 = vmatprep.subr.mxu0 0.0
  %699 = vmatpush1.msra.mxu0 0.0
  %700 = vmatprep.subr.mxu0 0.0
  %701 = vmatpush1.msra.mxu0 0.0
  %702 = vmatprep.subr.mxu0 0.0
  %703 = vmatpush1.msra.mxu0 0.0
  %704 = vmatprep.subr.mxu0 0.0
  %705 = vmatpush1.msra.mxu0 0.0
  %706 = vmatprep.subr.mxu0 0.0
  %707 = vmatpush1.msra.mxu0 0.0
  %708 = vmatprep.subr.mxu0 0.0
  %709 = vmatpush1.msra.mxu0 0.0
  %710 = vmatprep.subr.mxu0 0.0
  %711 = vmatpush1.msra.mxu0 0.0
  %712 = vmatprep.subr.mxu0 0.0
  %713 = vmatpush1.msra.mxu0 0.0
  %714 = vmatprep.subr.mxu0 0.0
  %715 = vmatpush1.msra.mxu0 0.0
  %716 = vmatprep.subr.mxu0 0.0
  %717 = vmatpush1.msra.mxu0 0.0
  %718 = vmatprep.subr.mxu0 0.0
  %719 = vmatpush1.msra.mxu0 0.0
  %720 = vmatprep.subr.mxu0 0.0
  %721 = vmatpush1.msra.mxu0 0.0
  %722 = vmatprep.subr.mxu0 0.0
  %723 = vmatpush1.msra.mxu0 0.0
  %724 = vmatprep.subr.mxu0 0.0
  %725 = vmatpush1.msra.mxu0 0.0
  %726 = vmatprep.subr.mxu0 0.0
  %727 = vmatpush1.msra.mxu0 0.0
  %728 = vmatprep.mubr.f32.mxu0 0.0
  %729 = vmatmul.mubr.f32.gmra.mrb[0].mxu0 %v27
  %v730 = vpop.f32.mrb[0].mxu0
  %v731 = vadd.f32 0.0, %v730
  %v732 = vpop.f32.mrb[0].mxu0
  %733 = vmatprep.mubr.f32.mxu0 0.0
  %734 = vmatmul.mubr.f32.gmra.mrb[0].mxu0 %v30
  %v735 = vpop.f32.mrb[0].mxu0
  %v736 = vadd.f32 0.0, %v735
  %v737 = vpop.f32.mrb[0].mxu0
  %738 = vmatprep.mubr.f32.mxu0 0.0
  %739 = vmatmul.mubr.f32.gmra.mrb[0].mxu0 %v33
  %v740 = vpop.f32.mrb[0].mxu0
  %v741 = vadd.f32 0.0, %v740
  %v742 = vpop.f32.mrb[0].mxu0
  %743 = vdwg.mxu0
  %v745 = vsel %vm25, %v731, 0
  %747 = vmatprep.subr.mxu0 0.0
  %748 = vmatpush1.msra.mxu0 %v17
  %749 = vmatprep.subr.mxu0 0.0
  %750 = vmatpush1.msra.mxu0 %v18
  %751 = vmatprep.subr.mxu0 0.0
  %752 = vmatpush1.msra.mxu0 0.0
  %753 = vmatprep.subr.mxu0 0.0
  %754 = vmatpush1.msra.mxu0 0.0
  %755 = vmatprep.subr.mxu0 0.0
  %756 = vmatpush1.msra.mxu0 0.0
  %757 = vmatprep.subr.mxu0 0.0
  %758 = vmatpush1.msra.mxu0 0.0
  %759 = vmatprep.subr.mxu0 0.0
  %760 = vmatpush1.msra.mxu0 0.0
  %761 = vmatprep.subr.mxu0 0.0
  %762 = vmatpush1.msra.mxu0 0.0
  %763 = vmatprep.subr.mxu0 0.0
  %764 = vmatpush1.msra.mxu0 0.0
  %765 = vmatprep.subr.mxu0 0.0
  %766 = vmatpush1.msra.mxu0 0.0
  %767 = vmatprep.subr.mxu0 0.0
  %768 = vmatpush1.msra.mxu0 0.0
  %769 = vmatprep.subr.mxu0 0.0
  %770 = vmatpush1.msra.mxu0 0.0
  %771 = vmatprep.subr.mxu0 0.0
  %772 = vmatpush1.msra.mxu0 0.0
  %773 = vmatprep.subr.mxu0 0.0
  %774 = vmatpush1.msra.mxu0 0.0
  %775 = vmatprep.subr.mxu0 0.0
  %776 = vmatpush1.msra.mxu0 0.0
  %777 = vmatprep.subr.mxu0 0.0
  %778 = vmatpush1.msra.mxu0 0.0
  %779 = vmatprep.subr.mxu0 0.0
  %780 = vmatpush1.msra.mxu0 0.0
  %781 = vmatprep.subr.mxu0 0.0
  %782 = vmatpush1.msra.mxu0 0.0
  %783 = vmatprep.subr.mxu0 0.0
  %784 = vmatpush1.msra.mxu0 0.0
  %785 = vmatprep.subr.mxu0 0.0
  %786 = vmatpush1.msra.mxu0 0.0
  %787 = vmatprep.subr.mxu0 0.0
  %788 = vmatpush1.msra.mxu0 0.0
  %789 = vmatprep.subr.mxu0 0.0
  %790 = vmatpush1.msra.mxu0 0.0
  %791 = vmatprep.subr.mxu0 0.0
  %792 = vmatpush1.msra.mxu0 0.0
  %793 = vmatprep.subr.mxu0 0.0
  %794 = vmatpush1.msra.mxu0 0.0
  %795 = vmatprep.subr.mxu0 0.0
  %796 = vmatpush1.msra.mxu0 0.0
  %797 = vmatprep.subr.mxu0 0.0
  %798 = vmatpush1.msra.mxu0 0.0
  %799 = vmatprep.subr.mxu0 0.0
  %800 = vmatpush1.msra.mxu0 0.0
  %801 = vmatprep.subr.mxu0 0.0
  %802 = vmatpush1.msra.mxu0 0.0
  %803 = vmatprep.subr.mxu0 0.0
  %804 = vmatpush1.msra.mxu0 0.0
  %805 = vmatprep.subr.mxu0 0.0
  %806 = vmatpush1.msra.mxu0 0.0
  %807 = vmatprep.subr.mxu0 0.0
  %808 = vmatpush1.msra.mxu0 0.0
  %809 = vmatprep.subr.mxu0 0.0
  %810 = vmatpush1.msra.mxu0 0.0
  %811 = vmatprep.mubr.f32.mxu0 0.0
  %812 = vmatmul.mubr.f32.gmra.mrb[0].mxu0 %v745
  %v813 = vpop.f32.mrb[0].mxu0
  %v814 = vadd.f32 0.0, %v813
  %v815 = vpop.f32.mrb[0].mxu0
  %816 = vdwg.mxu0
  %v818 = vsel %vm25, %v736, 0
  %820 = vmatprep.subr.mxu0 0.0
  %821 = vmatpush1.msra.mxu0 %v19
  %822 = vmatprep.subr.mxu0 0.0
  %823 = vmatpush1.msra.mxu0 %v20
  %824 = vmatprep.subr.mxu0 0.0
  %825 = vmatpush1.msra.mxu0 0.0
  %826 = vmatprep.subr.mxu0 0.0
  %827 = vmatpush1.msra.mxu0 0.0
  %828 = vmatprep.subr.mxu0 0.0
  %829 = vmatpush1.msra.mxu0 0.0
  %830 = vmatprep.subr.mxu0 0.0
  %831 = vmatpush1.msra.mxu0 0.0
  %832 = vmatprep.subr.mxu0 0.0
  %833 = vmatpush1.msra.mxu0 0.0
  %834 = vmatprep.subr.mxu0 0.0
  %835 = vmatpush1.msra.mxu0 0.0
  %836 = vmatprep.subr.mxu0 0.0
  %837 = vmatpush1.msra.mxu0 0.0
  %838 = vmatprep.subr.mxu0 0.0
  %839 = vmatpush1.msra.mxu0 0.0
  %840 = vmatprep.subr.mxu0 0.0
  %841 = vmatpush1.msra.mxu0 0.0
  %842 = vmatprep.subr.mxu0 0.0
  %843 = vmatpush1.msra.mxu0 0.0
  %844 = vmatprep.subr.mxu0 0.0
  %845 = vmatpush1.msra.mxu0 0.0
  %846 = vmatprep.subr.mxu0 0.0
  %847 = vmatpush1.msra.mxu0 0.0
  %848 = vmatprep.subr.mxu0 0.0
  %849 = vmatpush1.msra.mxu0 0.0
  %850 = vmatprep.subr.mxu0 0.0
  %851 = vmatpush1.msra.mxu0 0.0
  %852 = vmatprep.subr.mxu0 0.0
  %853 = vmatpush1.msra.mxu0 0.0
  %854 = vmatprep.subr.mxu0 0.0
  %855 = vmatpush1.msra.mxu0 0.0
  %856 = vmatprep.subr.mxu0 0.0
  %857 = vmatpush1.msra.mxu0 0.0
  %858 = vmatprep.subr.mxu0 0.0
  %859 = vmatpush1.msra.mxu0 0.0
  %860 = vmatprep.subr.mxu0 0.0
  %861 = vmatpush1.msra.mxu0 0.0
  %862 = vmatprep.subr.mxu0 0.0
  %863 = vmatpush1.msra.mxu0 0.0
  %864 = vmatprep.subr.mxu0 0.0
  %865 = vmatpush1.msra.mxu0 0.0
  %866 = vmatprep.subr.mxu0 0.0
  %867 = vmatpush1.msra.mxu0 0.0
  %868 = vmatprep.subr.mxu0 0.0
  %869 = vmatpush1.msra.mxu0 0.0
  %870 = vmatprep.subr.mxu0 0.0
  %871 = vmatpush1.msra.mxu0 0.0
  %872 = vmatprep.subr.mxu0 0.0
  %873 = vmatpush1.msra.mxu0 0.0
  %874 = vmatprep.subr.mxu0 0.0
  %875 = vmatpush1.msra.mxu0 0.0
  %876 = vmatprep.subr.mxu0 0.0
  %877 = vmatpush1.msra.mxu0 0.0
  %878 = vmatprep.subr.mxu0 0.0
  %879 = vmatpush1.msra.mxu0 0.0
  %880 = vmatprep.subr.mxu0 0.0
  %881 = vmatpush1.msra.mxu0 0.0
  %882 = vmatprep.subr.mxu0 0.0
  %883 = vmatpush1.msra.mxu0 0.0
  %884 = vmatprep.mubr.f32.mxu0 0.0
  %885 = vmatmul.mubr.f32.gmra.mrb[0].mxu0 %v818
  %v886 = vpop.f32.mrb[0].mxu0
  %v887 = vadd.f32 0.0, %v886
  %v888 = vpop.f32.mrb[0].mxu0
  %889 = vdwg.mxu0
  %v891 = vsel %vm25, %v741, 0
  %893 = vmatprep.subr.mxu0 0.0
  %894 = vmatpush1.msra.mxu0 %v21
  %895 = vmatprep.subr.mxu0 0.0
  %896 = vmatpush1.msra.mxu0 %v22
  %897 = vmatprep.subr.mxu0 0.0
  %898 = vmatpush1.msra.mxu0 0.0
  %899 = vmatprep.subr.mxu0 0.0
  %900 = vmatpush1.msra.mxu0 0.0
  %901 = vmatprep.subr.mxu0 0.0
  %902 = vmatpush1.msra.mxu0 0.0
  %903 = vmatprep.subr.mxu0 0.0
  %904 = vmatpush1.msra.mxu0 0.0
  %905 = vmatprep.subr.mxu0 0.0
  %906 = vmatpush1.msra.mxu0 0.0
  %907 = vmatprep.subr.mxu0 0.0
  %908 = vmatpush1.msra.mxu0 0.0
  %909 = vmatprep.subr.mxu0 0.0
  %910 = vmatpush1.msra.mxu0 0.0
  %911 = vmatprep.subr.mxu0 0.0
  %912 = vmatpush1.msra.mxu0 0.0
  %913 = vmatprep.subr.mxu0 0.0
  %914 = vmatpush1.msra.mxu0 0.0
  %915 = vmatprep.subr.mxu0 0.0
  %916 = vmatpush1.msra.mxu0 0.0
  %917 = vmatprep.subr.mxu0 0.0
  %918 = vmatpush1.msra.mxu0 0.0
  %919 = vmatprep.subr.mxu0 0.0
  %920 = vmatpush1.msra.mxu0 0.0
  %921 = vmatprep.subr.mxu0 0.0
  %922 = vmatpush1.msra.mxu0 0.0
  %923 = vmatprep.subr.mxu0 0.0
  %924 = vmatpush1.msra.mxu0 0.0
  %925 = vmatprep.subr.mxu0 0.0
  %926 = vmatpush1.msra.mxu0 0.0
  %927 = vmatprep.subr.mxu0 0.0
  %928 = vmatpush1.msra.mxu0 0.0
  %929 = vmatprep.subr.mxu0 0.0
  %930 = vmatpush1.msra.mxu0 0.0
  %931 = vmatprep.subr.mxu0 0.0
  %932 = vmatpush1.msra.mxu0 0.0
  %933 = vmatprep.subr.mxu0 0.0
  %934 = vmatpush1.msra.mxu0 0.0
  %935 = vmatprep.subr.mxu0 0.0
  %936 = vmatpush1.msra.mxu0 0.0
  %937 = vmatprep.subr.mxu0 0.0
  %938 = vmatpush1.msra.mxu0 0.0
  %939 = vmatprep.subr.mxu0 0.0
  %940 = vmatpush1.msra.mxu0 0.0
  %941 = vmatprep.subr.mxu0 0.0
  %942 = vmatpush1.msra.mxu0 0.0
  %943 = vmatprep.subr.mxu0 0.0
  %944 = vmatpush1.msra.mxu0 0.0
  %945 = vmatprep.subr.mxu0 0.0
  %946 = vmatpush1.msra.mxu0 0.0
  %947 = vmatprep.subr.mxu0 0.0
  %948 = vmatpush1.msra.mxu0 0.0
  %949 = vmatprep.subr.mxu0 0.0
  %950 = vmatpush1.msra.mxu0 0.0
  %951 = vmatprep.subr.mxu0 0.0
  %952 = vmatpush1.msra.mxu0 0.0
  %953 = vmatprep.subr.mxu0 0.0
  %954 = vmatpush1.msra.mxu0 0.0
  %955 = vmatprep.subr.mxu0 0.0
  %956 = vmatpush1.msra.mxu0 0.0
  %957 = vmatprep.mubr.f32.mxu0 0.0
  %958 = vmatmul.mubr.f32.gmra.mrb[0].mxu0 %v891
  %v959 = vpop.f32.mrb[0].mxu0
  %v960 = vadd.f32 0.0, %v959
  %v961 = vpop.f32.mrb[0].mxu0
  %962 = vdwg.mxu0
  %963 = vst.msk [vmem:[%s3 + $0x10] sm:$0xff] %vm334, %v814
  %965 = vrot.lane.b32.xlu0 %v887, 8
  %v966 = vpop.permute.xlu0 %965
  %968 = vst.msk [vmem:[%s3 + $0x10] sm:$0xff] %vm340, %v966
  %970 = vrot.lane.b32.xlu0 %v960, 16
  %v971 = vpop.permute.xlu0 %970
  %973 = vst.msk [vmem:[%s3 + $0x10] sm:$0xff] %vm346, %v971
  %s974 = scalar_lea.vmem %s2, 48
  %v975 = vld [vmem:[%s974] sm:$0xff]
  %v976 = vld [vmem:[%s974 + $0x8] sm:$0xff]
  %977 = vmatprep.subr.mxu0 0.0
  %978 = vmatpush1.msra.mxu0 %v975
  %979 = vmatprep.subr.mxu0 0.0
  %980 = vmatpush1.msra.mxu0 %v976
  %981 = vmatprep.subr.mxu0 0.0
  %982 = vmatpush1.msra.mxu0 0.0
  %983 = vmatprep.subr.mxu0 0.0
  %984 = vmatpush1.msra.mxu0 0.0
  %985 = vmatprep.subr.mxu0 0.0
  %986 = vmatpush1.msra.mxu0 0.0
  %987 = vmatprep.subr.mxu0 0.0
  %988 = vmatpush1.msra.mxu0 0.0
  %989 = vmatprep.subr.mxu0 0.0
  %990 = vmatpush1.msra.mxu0 0.0
  %991 = vmatprep.subr.mxu0 0.0
  %992 = vmatpush1.msra.mxu0 0.0
  %993 = vmatprep.subr.mxu0 0.0
  %994 = vmatpush1.msra.mxu0 0.0
  %995 = vmatprep.subr.mxu0 0.0
  %996 = vmatpush1.msra.mxu0 0.0
  %997 = vmatprep.subr.mxu0 0.0
  %998 = vmatpush1.msra.mxu0 0.0
  %999 = vmatprep.subr.mxu0 0.0
  %1000 = vmatpush1.msra.mxu0 0.0
  %1001 = vmatprep.subr.mxu0 0.0
  %1002 = vmatpush1.msra.mxu0 0.0
  %1003 = vmatprep.subr.mxu0 0.0
  %1004 = vmatpush1.msra.mxu0 0.0
  %1005 = vmatprep.subr.mxu0 0.0
  %1006 = vmatpush1.msra.mxu0 0.0
  %1007 = vmatprep.subr.mxu0 0.0
  %1008 = vmatpush1.msra.mxu0 0.0
  %1009 = vmatprep.subr.mxu0 0.0
  %1010 = vmatpush1.msra.mxu0 0.0
  %1011 = vmatprep.subr.mxu0 0.0
  %1012 = vmatpush1.msra.mxu0 0.0
  %1013 = vmatprep.subr.mxu0 0.0
  %1014 = vmatpush1.msra.mxu0 0.0
  %1015 = vmatprep.subr.mxu0 0.0
  %1016 = vmatpush1.msra.mxu0 0.0
  %1017 = vmatprep.subr.mxu0 0.0
  %1018 = vmatpush1.msra.mxu0 0.0
  %1019 = vmatprep.subr.mxu0 0.0
  %1020 = vmatpush1.msra.mxu0 0.0
  %1021 = vmatprep.subr.mxu0 0.0
  %1022 = vmatpush1.msra.mxu0 0.0
  %1023 = vmatprep.subr.mxu0 0.0
  %1024 = vmatpush1.msra.mxu0 0.0
  %1025 = vmatprep.subr.mxu0 0.0
  %1026 = vmatpush1.msra.mxu0 0.0
  %1027 = vmatprep.subr.mxu0 0.0
  %1028 = vmatpush1.msra.mxu0 0.0
  %1029 = vmatprep.subr.mxu0 0.0
  %1030 = vmatpush1.msra.mxu0 0.0
  %1031 = vmatprep.subr.mxu0 0.0
  %1032 = vmatpush1.msra.mxu0 0.0
  %1033 = vmatprep.subr.mxu0 0.0
  %1034 = vmatpush1.msra.mxu0 0.0
  %1035 = vmatprep.subr.mxu0 0.0
  %1036 = vmatpush1.msra.mxu0 0.0
  %1037 = vmatprep.subr.mxu0 0.0
  %1038 = vmatpush1.msra.mxu0 0.0
  %1039 = vmatprep.subr.mxu0 0.0
  %1040 = vmatpush1.msra.mxu0 0.0
  %1041 = vmatprep.mubr.f32.mxu0 0.0
  %1042 = vmatmul.mubr.f32.gmra.mrb[0].mxu0 %v27
  %v1043 = vpop.f32.mrb[0].mxu0
  %v1044 = vadd.f32 0.0, %v1043
  %v1045 = vpop.f32.mrb[0].mxu0
  %1046 = vmatprep.mubr.f32.mxu0 0.0
  %1047 = vmatmul.mubr.f32.gmra.mrb[0].mxu0 %v30
  %v1048 = vpop.f32.mrb[0].mxu0
  %v1049 = vadd.f32 0.0, %v1048
  %v1050 = vpop.f32.mrb[0].mxu0
  %1051 = vmatprep.mubr.f32.mxu0 0.0
  %1052 = vmatmul.mubr.f32.gmra.mrb[0].mxu0 %v33
  %v1053 = vpop.f32.mrb[0].mxu0
  %v1054 = vadd.f32 0.0, %v1053
  %v1055 = vpop.f32.mrb[0].mxu0
  %1056 = vdwg.mxu0
  %v1058 = vsel %vm25, %v1044, 0
  %1060 = vmatprep.subr.mxu0 0.0
  %1061 = vmatpush1.msra.mxu0 %v17
  %1062 = vmatprep.subr.mxu0 0.0
  %1063 = vmatpush1.msra.mxu0 %v18
  %1064 = vmatprep.subr.mxu0 0.0
  %1065 = vmatpush1.msra.mxu0 0.0
  %1066 = vmatprep.subr.mxu0 0.0
  %1067 = vmatpush1.msra.mxu0 0.0
  %1068 = vmatprep.subr.mxu0 0.0
  %1069 = vmatpush1.msra.mxu0 0.0
  %1070 = vmatprep.subr.mxu0 0.0
  %1071 = vmatpush1.msra.mxu0 0.0
  %1072 = vmatprep.subr.mxu0 0.0
  %1073 = vmatpush1.msra.mxu0 0.0
  %1074 = vmatprep.subr.mxu0 0.0
  %1075 = vmatpush1.msra.mxu0 0.0
  %1076 = vmatprep.subr.mxu0 0.0
  %1077 = vmatpush1.msra.mxu0 0.0
  %1078 = vmatprep.subr.mxu0 0.0
  %1079 = vmatpush1.msra.mxu0 0.0
  %1080 = vmatprep.subr.mxu0 0.0
  %1081 = vmatpush1.msra.mxu0 0.0
  %1082 = vmatprep.subr.mxu0 0.0
  %1083 = vmatpush1.msra.mxu0 0.0
  %1084 = vmatprep.subr.mxu0 0.0
  %1085 = vmatpush1.msra.mxu0 0.0
  %1086 = vmatprep.subr.mxu0 0.0
  %1087 = vmatpush1.msra.mxu0 0.0
  %1088 = vmatprep.subr.mxu0 0.0
  %1089 = vmatpush1.msra.mxu0 0.0
  %1090 = vmatprep.subr.mxu0 0.0
  %1091 = vmatpush1.msra.mxu0 0.0
  %1092 = vmatprep.subr.mxu0 0.0
  %1093 = vmatpush1.msra.mxu0 0.0
  %1094 = vmatprep.subr.mxu0 0.0
  %1095 = vmatpush1.msra.mxu0 0.0
  %1096 = vmatprep.subr.mxu0 0.0
  %1097 = vmatpush1.msra.mxu0 0.0
  %1098 = vmatprep.subr.mxu0 0.0
  %1099 = vmatpush1.msra.mxu0 0.0
  %1100 = vmatprep.subr.mxu0 0.0
  %1101 = vmatpush1.msra.mxu0 0.0
  %1102 = vmatprep.subr.mxu0 0.0
  %1103 = vmatpush1.msra.mxu0 0.0
  %1104 = vmatprep.subr.mxu0 0.0
  %1105 = vmatpush1.msra.mxu0 0.0
  %1106 = vmatprep.subr.mxu0 0.0
  %1107 = vmatpush1.msra.mxu0 0.0
  %1108 = vmatprep.subr.mxu0 0.0
  %1109 = vmatpush1.msra.mxu0 0.0
  %1110 = vmatprep.subr.mxu0 0.0
  %1111 = vmatpush1.msra.mxu0 0.0
  %1112 = vmatprep.subr.mxu0 0.0
  %1113 = vmatpush1.msra.mxu0 0.0
  %1114 = vmatprep.subr.mxu0 0.0
  %1115 = vmatpush1.msra.mxu0 0.0
  %1116 = vmatprep.subr.mxu0 0.0
  %1117 = vmatpush1.msra.mxu0 0.0
  %1118 = vmatprep.subr.mxu0 0.0
  %1119 = vmatpush1.msra.mxu0 0.0
  %1120 = vmatprep.subr.mxu0 0.0
  %1121 = vmatpush1.msra.mxu0 0.0
  %1122 = vmatprep.subr.mxu0 0.0
  %1123 = vmatpush1.msra.mxu0 0.0
  %1124 = vmatprep.mubr.f32.mxu0 0.0
  %1125 = vmatmul.mubr.f32.gmra.mrb[0].mxu0 %v1058
  %v1126 = vpop.f32.mrb[0].mxu0
  %v1127 = vadd.f32 0.0, %v1126
  %v1128 = vpop.f32.mrb[0].mxu0
  %1129 = vdwg.mxu0
  %v1131 = vsel %vm25, %v1049, 0
  %1133 = vmatprep.subr.mxu0 0.0
  %1134 = vmatpush1.msra.mxu0 %v19
  %1135 = vmatprep.subr.mxu0 0.0
  %1136 = vmatpush1.msra.mxu0 %v20
  %1137 = vmatprep.subr.mxu0 0.0
  %1138 = vmatpush1.msra.mxu0 0.0
  %1139 = vmatprep.subr.mxu0 0.0
  %1140 = vmatpush1.msra.mxu0 0.0
  %1141 = vmatprep.subr.mxu0 0.0
  %1142 = vmatpush1.msra.mxu0 0.0
  %1143 = vmatprep.subr.mxu0 0.0
  %1144 = vmatpush1.msra.mxu0 0.0
  %1145 = vmatprep.subr.mxu0 0.0
  %1146 = vmatpush1.msra.mxu0 0.0
  %1147 = vmatprep.subr.mxu0 0.0
  %1148 = vmatpush1.msra.mxu0 0.0
  %1149 = vmatprep.subr.mxu0 0.0
  %1150 = vmatpush1.msra.mxu0 0.0
  %1151 = vmatprep.subr.mxu0 0.0
  %1152 = vmatpush1.msra.mxu0 0.0
  %1153 = vmatprep.subr.mxu0 0.0
  %1154 = vmatpush1.msra.mxu0 0.0
  %1155 = vmatprep.subr.mxu0 0.0
  %1156 = vmatpush1.msra.mxu0 0.0
  %1157 = vmatprep.subr.mxu0 0.0
  %1158 = vmatpush1.msra.mxu0 0.0
  %1159 = vmatprep.subr.mxu0 0.0
  %1160 = vmatpush1.msra.mxu0 0.0
  %1161 = vmatprep.subr.mxu0 0.0
  %1162 = vmatpush1.msra.mxu0 0.0
  %1163 = vmatprep.subr.mxu0 0.0
  %1164 = vmatpush1.msra.mxu0 0.0
  %1165 = vmatprep.subr.mxu0 0.0
  %1166 = vmatpush1.msra.mxu0 0.0
  %1167 = vmatprep.subr.mxu0 0.0
  %1168 = vmatpush1.msra.mxu0 0.0
  %1169 = vmatprep.subr.mxu0 0.0
  %1170 = vmatpush1.msra.mxu0 0.0
  %1171 = vmatprep.subr.mxu0 0.0
  %1172 = vmatpush1.msra.mxu0 0.0
  %1173 = vmatprep.subr.mxu0 0.0
  %1174 = vmatpush1.msra.mxu0 0.0
  %1175 = vmatprep.subr.mxu0 0.0
  %1176 = vmatpush1.msra.mxu0 0.0
  %1177 = vmatprep.subr.mxu0 0.0
  %1178 = vmatpush1.msra.mxu0 0.0
  %1179 = vmatprep.subr.mxu0 0.0
  %1180 = vmatpush1.msra.mxu0 0.0
  %1181 = vmatprep.subr.mxu0 0.0
  %1182 = vmatpush1.msra.mxu0 0.0
  %1183 = vmatprep.subr.mxu0 0.0
  %1184 = vmatpush1.msra.mxu0 0.0
  %1185 = vmatprep.subr.mxu0 0.0
  %1186 = vmatpush1.msra.mxu0 0.0
  %1187 = vmatprep.subr.mxu0 0.0
  %1188 = vmatpush1.msra.mxu0 0.0
  %1189 = vmatprep.subr.mxu0 0.0
  %1190 = vmatpush1.msra.mxu0 0.0
  %1191 = vmatprep.subr.mxu0 0.0
  %1192 = vmatpush1.msra.mxu0 0.0
  %1193 = vmatprep.subr.mxu0 0.0
  %1194 = vmatpush1.msra.mxu0 0.0
  %1195 = vmatprep.subr.mxu0 0.0
  %1196 = vmatpush1.msra.mxu0 0.0
  %1197 = vmatprep.mubr.f32.mxu0 0.0
  %1198 = vmatmul.mubr.f32.gmra.mrb[0].mxu0 %v1131
  %v1199 = vpop.f32.mrb[0].mxu0
  %v1200 = vadd.f32 0.0, %v1199
  %v1201 = vpop.f32.mrb[0].mxu0
  %1202 = vdwg.mxu0
  %v1204 = vsel %vm25, %v1054, 0
  %1206 = vmatprep.subr.mxu0 0.0
  %1207 = vmatpush1.msra.mxu0 %v21
  %1208 = vmatprep.subr.mxu0 0.0
  %1209 = vmatpush1.msra.mxu0 %v22
  %1210 = vmatprep.subr.mxu0 0.0
  %1211 = vmatpush1.msra.mxu0 0.0
  %1212 = vmatprep.subr.mxu0 0.0
  %1213 = vmatpush1.msra.mxu0 0.0
  %1214 = vmatprep.subr.mxu0 0.0
  %1215 = vmatpush1.msra.mxu0 0.0
  %1216 = vmatprep.subr.mxu0 0.0
  %1217 = vmatpush1.msra.mxu0 0.0
  %1218 = vmatprep.subr.mxu0 0.0
  %1219 = vmatpush1.msra.mxu0 0.0
  %1220 = vmatprep.subr.mxu0 0.0
  %1221 = vmatpush1.msra.mxu0 0.0
  %1222 = vmatprep.subr.mxu0 0.0
  %1223 = vmatpush1.msra.mxu0 0.0
  %1224 = vmatprep.subr.mxu0 0.0
  %1225 = vmatpush1.msra.mxu0 0.0
  %1226 = vmatprep.subr.mxu0 0.0
  %1227 = vmatpush1.msra.mxu0 0.0
  %1228 = vmatprep.subr.mxu0 0.0
  %1229 = vmatpush1.msra.mxu0 0.0
  %1230 = vmatprep.subr.mxu0 0.0
  %1231 = vmatpush1.msra.mxu0 0.0
  %1232 = vmatprep.subr.mxu0 0.0
  %1233 = vmatpush1.msra.mxu0 0.0
  %1234 = vmatprep.subr.mxu0 0.0
  %1235 = vmatpush1.msra.mxu0 0.0
  %1236 = vmatprep.subr.mxu0 0.0
  %1237 = vmatpush1.msra.mxu0 0.0
  %1238 = vmatprep.subr.mxu0 0.0
  %1239 = vmatpush1.msra.mxu0 0.0
  %1240 = vmatprep.subr.mxu0 0.0
  %1241 = vmatpush1.msra.mxu0 0.0
  %1242 = vmatprep.subr.mxu0 0.0
  %1243 = vmatpush1.msra.mxu0 0.0
  %1244 = vmatprep.subr.mxu0 0.0
  %1245 = vmatpush1.msra.mxu0 0.0
  %1246 = vmatprep.subr.mxu0 0.0
  %1247 = vmatpush1.msra.mxu0 0.0
  %1248 = vmatprep.subr.mxu0 0.0
  %1249 = vmatpush1.msra.mxu0 0.0
  %1250 = vmatprep.subr.mxu0 0.0
  %1251 = vmatpush1.msra.mxu0 0.0
  %1252 = vmatprep.subr.mxu0 0.0
  %1253 = vmatpush1.msra.mxu0 0.0
  %1254 = vmatprep.subr.mxu0 0.0
  %1255 = vmatpush1.msra.mxu0 0.0
  %1256 = vmatprep.subr.mxu0 0.0
  %1257 = vmatpush1.msra.mxu0 0.0
  %1258 = vmatprep.subr.mxu0 0.0
  %1259 = vmatpush1.msra.mxu0 0.0
  %1260 = vmatprep.subr.mxu0 0.0
  %1261 = vmatpush1.msra.mxu0 0.0
  %1262 = vmatprep.subr.mxu0 0.0
  %1263 = vmatpush1.msra.mxu0 0.0
  %1264 = vmatprep.subr.mxu0 0.0
  %1265 = vmatpush1.msra.mxu0 0.0
  %1266 = vmatprep.subr.mxu0 0.0
  %1267 = vmatpush1.msra.mxu0 0.0
  %1268 = vmatprep.subr.mxu0 0.0
  %1269 = vmatpush1.msra.mxu0 0.0
  %1270 = vmatprep.mubr.f32.mxu0 0.0
  %1271 = vmatmul.mubr.f32.gmra.mrb[0].mxu0 %v1204
  %v1272 = vpop.f32.mrb[0].mxu0
  %v1273 = vadd.f32 0.0, %v1272
  %v1274 = vpop.f32.mrb[0].mxu0
  %1275 = vdwg.mxu0
  %1276 = vst.msk [vmem:[%s3 + $0x18] sm:$0xff] %vm334, %v1127
  %1278 = vrot.lane.b32.xlu0 %v1200, 8
  %v1279 = vpop.permute.xlu0 %1278
  %1281 = vst.msk [vmem:[%s3 + $0x18] sm:$0xff] %vm340, %v1279
  %1283 = vrot.lane.b32.xlu0 %v1273, 16
  %v1284 = vpop.permute.xlu0 %1283
  %1286 = vst.msk [vmem:[%s3 + $0x18] sm:$0xff] %vm346, %v1284
  // Predicated region
  $region14: #{tpu_custom_call.1} parent=0 // pred_check
    _
  $region15: #{tpu_custom_call.1} parent=0 // pred_check_branch
    %1288 = sbr.rel (0) target = $region17
  $region16: #{tpu_custom_call.1} parent=0 // pred_region
    _
  $region17: #{tpu_custom_call.1} parent=0 // pred_fallthru
    _
  // Predicated region
  $region18: #{tpu_custom_call.1} parent=0 // pred_check
    _
  $region19: #{tpu_custom_call.1} parent=0 // pred_check_branch
    %1290 = sbr.rel (0) target = $region21
  $region20: #{tpu_custom_call.1} parent=0 // pred_region
    _
  $region21: #{tpu_custom_call.1} parent=0 // pred_fallthru
    _

</llo_original>
